<compile_context>
chip_gen: v5e
topology: v5e:2x2
jax: 0.10.0
libtpu: 0.0.40
codegen_flags: <defaults>
</compile_context>

<pallas_src>
import functools

import jax
import jax.numpy as jnp
from jax.experimental import pallas as pl
from jax.experimental.pallas import tpu as pltpu

# ----------------------- scaled-down config -----------------------
BATCH = 2
SEQ = 8
HIDDEN = 64            # stands in for bert_hidden_dim = 1024
NUM_HEADS = 4
HEAD_DIM = HIDDEN // NUM_HEADS
FFN = 128
NUM_LAYERS = 2
VOCAB = 100
MAX_POS = 64
PAD_IDX = 1            # RoBERTa padding_idx
NUM_LABELS = 3         # tagset_size
LN_EPS = 1e-5

_DN = (((1,), (0,)), ((), ()))       # standard  a @ b
_DN_T = (((1,), (1,)), ((), ()))     # a @ b.T (MXU handles transposed rhs)
_INV_SQRT2 = 0.7071067811865476


def _ln(x, g, b):
    """LayerNorm on an f32 value; gamma/beta are [1, H]."""
    mu = jnp.mean(x, axis=-1, keepdims=True)
    var = jnp.mean(jnp.square(x - mu), axis=-1, keepdims=True)
    return (x - mu) * jax.lax.rsqrt(var + LN_EPS) * g + b


def _gelu(x):
    return 0.5 * x * (1.0 + jax.lax.erf(x * _INV_SQRT2))


# ----------------------- embedding LayerNorm kernel -----------------------
def _embed_ln_kernel(x_ref, g_ref, b_ref, o_ref):
    o_ref[...] = _ln(x_ref[...], g_ref[...], b_ref[...]).astype(o_ref.dtype)


def embed_layernorm(x, gamma, beta):
    M, H = x.shape
    return pl.pallas_call(
        _embed_ln_kernel,
        grid=(1,),
        in_specs=[
            pl.BlockSpec((M, H), lambda i: (0, 0)),
            pl.BlockSpec((1, H), lambda i: (0, 0)),
            pl.BlockSpec((1, H), lambda i: (0, 0)),
        ],
        out_specs=pl.BlockSpec((M, H), lambda i: (0, 0)),
        out_shape=jax.ShapeDtypeStruct((M, H), jnp.float32),
    )(x, gamma, beta)


# ----------------------- fused encoder-layer kernel -----------------------
def _encoder_layer_kernel(x_ref, mask_ref,
                          qkv_w_ref, qkv_b_ref,
                          o_w_ref, o_b_ref, ln1_g_ref, ln1_b_ref,
                          i_w_ref, i_b_ref, f_w_ref, f_b_ref,
                          ln2_g_ref, ln2_b_ref,
                          o_ref, ctx_ref,
                          *, num_heads, head_dim, scale):
    # One grid step = one batch element: x [S, H], mask [S, S] (additive).
    x = x_ref[...]                                   # f32 [S, H]
    x_bf = x.astype(jnp.bfloat16)
    mask = mask_ref[...]                             # f32 [S, S]
    H = num_heads * head_dim

    # ---- fused QKV projection: one MXU pass, lane-dense 3H intermediate ----
    qkv = jax.lax.dot_general(x_bf, qkv_w_ref[...], _DN,
                              preferred_element_type=jnp.float32)
    qkv = qkv + qkv_b_ref[...]                       # [S, 3H]

    # ---- all heads of this batch element (static lane slices, unrolled) ----
    for h in range(num_heads):
        lo = h * head_dim
        q_h = qkv[:, lo:lo + head_dim].astype(jnp.bfloat16)
        k_h = qkv[:, H + lo:H + lo + head_dim].astype(jnp.bfloat16)
        v_h = qkv[:, 2 * H + lo:2 * H + lo + head_dim].astype(jnp.bfloat16)
        s = jax.lax.dot_general(q_h, k_h, _DN_T,
                                preferred_element_type=jnp.float32)
        s = s * scale + mask
        s = s - jnp.max(s, axis=-1, keepdims=True)
        p = jnp.exp(s)
        p = p * pl.reciprocal(jnp.sum(p, axis=-1, keepdims=True), approx=True)
        ctx_ref[:, lo:lo + head_dim] = jax.lax.dot_general(
            p.astype(jnp.bfloat16), v_h, _DN,
            preferred_element_type=jnp.float32)

    ctx = ctx_ref[...].astype(jnp.bfloat16)          # [S, H]

    # ---- attention output projection + residual + LN (fused) ----
    attn_out = jax.lax.dot_general(ctx, o_w_ref[...], _DN,
                                   preferred_element_type=jnp.float32)
    attn_out = attn_out + o_b_ref[...]
    x1 = _ln(attn_out + x, ln1_g_ref[...], ln1_b_ref[...])

    # ---- FFN: intermediate (gelu) + output + residual + LN (fused) ----
    h1 = jax.lax.dot_general(x1.astype(jnp.bfloat16), i_w_ref[...], _DN,
                             preferred_element_type=jnp.float32)
    h1 = _gelu(h1 + i_b_ref[...])
    h2 = jax.lax.dot_general(h1.astype(jnp.bfloat16), f_w_ref[...], _DN,
                             preferred_element_type=jnp.float32)
    h2 = h2 + f_b_ref[...]
    x2 = _ln(h2 + x1, ln2_g_ref[...], ln2_b_ref[...])

    o_ref[...] = x2.astype(o_ref.dtype)


def encoder_layer(p, x2d, attn_mask):
    kernel = functools.partial(
        _encoder_layer_kernel,
        num_heads=NUM_HEADS, head_dim=HEAD_DIM, scale=1.0 / (HEAD_DIM ** 0.5))
    const = lambda b: (0, 0)
    return pl.pallas_call(
        kernel,
        grid=(BATCH,),
        in_specs=[
            pl.BlockSpec((SEQ, HIDDEN), lambda b: (b, 0)),        # x (per-batch rows)
            pl.BlockSpec((None, SEQ, SEQ), lambda b: (b, 0, 0)),  # additive mask
            pl.BlockSpec((HIDDEN, 3 * HIDDEN), const),            # fused QKV weight
            pl.BlockSpec((1, 3 * HIDDEN), const),
            pl.BlockSpec((HIDDEN, HIDDEN), const),                # attn output proj
            pl.BlockSpec((1, HIDDEN), const),
            pl.BlockSpec((1, HIDDEN), const),                     # attn LN gamma
            pl.BlockSpec((1, HIDDEN), const),                     # attn LN beta
            pl.BlockSpec((HIDDEN, FFN), const),                   # FFN in
            pl.BlockSpec((1, FFN), const),
            pl.BlockSpec((FFN, HIDDEN), const),                   # FFN out
            pl.BlockSpec((1, HIDDEN), const),
            pl.BlockSpec((1, HIDDEN), const),                     # out LN gamma
            pl.BlockSpec((1, HIDDEN), const),                     # out LN beta
        ],
        out_specs=pl.BlockSpec((SEQ, HIDDEN), lambda b: (b, 0)),
        out_shape=jax.ShapeDtypeStruct((BATCH * SEQ, HIDDEN), jnp.float32),
        scratch_shapes=[pltpu.VMEM((SEQ, HIDDEN), jnp.float32)],
        compiler_params=pltpu.CompilerParams(
            dimension_semantics=("parallel",)),                   # megacore on v7x
    )(x2d, attn_mask,
      p["qkv_w"], p["qkv_b"], p["o_w"], p["o_b"],
      p["attn_ln_g"], p["attn_ln_b"],
      p["i_w"], p["i_b"], p["f_w"], p["f_b"],
      p["out_ln_g"], p["out_ln_b"])


# ----------------------- fused pooler + classification head -----------------------
def _head_kernel(cls_ref, pw_ref, pb_ref, dw_ref, db_ref, ow_ref, ob_ref,
                 hid_ref, score_ref):
    cls = cls_ref[...].astype(jnp.bfloat16)          # [B, H]
    # RobertaModel pooler: Linear + tanh on [CLS]  (== outputs_single[1])
    pooled = jnp.tanh(
        jax.lax.dot_general(cls, pw_ref[...], _DN,
                            preferred_element_type=jnp.float32) + pb_ref[...])
    # RobertaClassificationHead (dropout is identity in eval)
    last_hidden = jnp.tanh(
        jax.lax.dot_general(pooled.astype(jnp.bfloat16), dw_ref[...], _DN,
                            preferred_element_type=jnp.float32) + db_ref[...])
    score = jax.lax.dot_general(last_hidden.astype(jnp.bfloat16), ow_ref[...], _DN,
                                preferred_element_type=jnp.float32) + ob_ref[...]
    hid_ref[...] = last_hidden
    score_ref[...] = score


def classification_head(params, cls):
    B, H = cls.shape
    const = lambda i: (0, 0)
    return pl.pallas_call(
        _head_kernel,
        grid=(1,),
        in_specs=[
            pl.BlockSpec((B, H), const),
            pl.BlockSpec((H, H), const),
            pl.BlockSpec((1, H), const),
            pl.BlockSpec((H, H), const),
            pl.BlockSpec((1, H), const),
            pl.BlockSpec((H, NUM_LABELS), const),
            pl.BlockSpec((1, NUM_LABELS), const),
        ],
        out_specs=[
            pl.BlockSpec((B, H), const),
            pl.BlockSpec((B, NUM_LABELS), const),
        ],
        out_shape=(jax.ShapeDtypeStruct((B, H), jnp.float32),
                   jax.ShapeDtypeStruct((B, NUM_LABELS), jnp.float32)),
    )(cls, params["pool_w"], params["pool_b"],
      params["dense_w"], params["dense_b"], params["out_w"], params["out_b"])


# ----------------------- deterministic parameter init -----------------------
def _dense_init(key, fan_in, fan_out):
    kw, kb = jax.random.split(key)
    w = (jax.random.normal(kw, (fan_in, fan_out), jnp.float32) * 0.02).astype(jnp.bfloat16)
    b = jax.random.normal(kb, (1, fan_out), jnp.float32) * 0.02
    return w, b


def init_params(key):
    keys = jax.random.split(key, 8 + NUM_LAYERS)
    params = {}
    params["word_emb"] = jax.random.normal(keys[0], (VOCAB, HIDDEN), jnp.float32) * 0.02
    params["pos_emb"] = jax.random.normal(keys[1], (MAX_POS, HIDDEN), jnp.float32) * 0.02
    # padding_idx rows are zero in the real model
    params["word_emb"] = params["word_emb"].at[PAD_IDX].set(0.0)
    params["pos_emb"] = params["pos_emb"].at[PAD_IDX].set(0.0)
    params["type_emb"] = jax.random.normal(keys[2], (1, HIDDEN), jnp.float32) * 0.02
    params["emb_ln_g"] = jnp.ones((1, HIDDEN), jnp.float32)
    params["emb_ln_b"] = jnp.zeros((1, HIDDEN), jnp.float32)

    layers = []
    for li in range(NUM_LAYERS):
        lk = jax.random.split(keys[3 + li], 4)
        lp = {}
        lp["qkv_w"], lp["qkv_b"] = _dense_init(lk[0], HIDDEN, 3 * HIDDEN)   # fused Q|K|V
        lp["o_w"], lp["o_b"] = _dense_init(lk[1], HIDDEN, HIDDEN)
        lp["attn_ln_g"] = jnp.ones((1, HIDDEN), jnp.float32)
        lp["attn_ln_b"] = jnp.zeros((1, HIDDEN), jnp.float32)
        lp["i_w"], lp["i_b"] = _dense_init(lk[2], HIDDEN, FFN)
        lp["f_w"], lp["f_b"] = _dense_init(lk[3], FFN, HIDDEN)
        lp["out_ln_g"] = jnp.ones((1, HIDDEN), jnp.float32)
        lp["out_ln_b"] = jnp.zeros((1, HIDDEN), jnp.float32)
        layers.append(lp)
    params["layers"] = layers

    params["pool_w"], params["pool_b"] = _dense_init(keys[3 + NUM_LAYERS], HIDDEN, HIDDEN)
    # RobertaClassificationHead
    params["dense_w"], params["dense_b"] = _dense_init(keys[4 + NUM_LAYERS], HIDDEN, HIDDEN)
    params["out_w"], params["out_b"] = _dense_init(keys[5 + NUM_LAYERS], HIDDEN, NUM_LABELS)
    return params


# ----------------------- model forward (eval mode: dropout = identity) -----------------------
def roberta_embeddings(params, input_ids):
    # RoBERTa position ids: padding_idx + cumulative count of non-pad tokens
    ne = (input_ids != PAD_IDX).astype(jnp.int32)
    position_ids = jnp.cumsum(ne, axis=1) * ne + PAD_IDX
    word = jnp.take(params["word_emb"], input_ids, axis=0)        # glue: gather
    pos = jnp.take(params["pos_emb"], position_ids, axis=0)       # glue: gather
    tok = params["type_emb"][0][None, None, :]
    emb = (word + pos + tok).reshape(BATCH * SEQ, HIDDEN)
    return embed_layernorm(emb, params["emb_ln_g"], params["emb_ln_b"])


@jax.jit
def roberta_for_sequence_classification(params, input_ids, input_mask):
    # additive key-padding mask, broadcast to [B, S(query), S(key)]
    key_mask = (1.0 - input_mask.astype(jnp.float32)) * -10000.0
    attn_mask = jnp.broadcast_to(key_mask[:, None, :], (BATCH, SEQ, SEQ))

    x2d = roberta_embeddings(params, input_ids)                   # f32 [B*S, H]
    for lp in params["layers"]:
        x2d = encoder_layer(lp, x2d, attn_mask)                   # one pallas_call / layer

    cls = x2d.reshape(BATCH, SEQ, HIDDEN)[:, 0, :]                # [B, H]
    last_hidden, score_single = classification_head(params, cls)
    return last_hidden, score_single


if __name__ == "__main__":
    key = jax.random.PRNGKey(0)
    pkey, ikey = jax.random.split(key)
    params = init_params(pkey)

    input_ids = jax.random.randint(ikey, (BATCH, SEQ), 2, VOCAB, dtype=jnp.int32)
    input_mask = jnp.ones((BATCH, SEQ), jnp.int32)
    # make the tail of the second sequence padding
    input_mask = input_mask.at[1, SEQ - 3:].set(0)
    input_ids = jnp.where(input_mask == 0, PAD_IDX, input_ids)

    last_hidden, score = roberta_for_sequence_classification(params, input_ids, input_mask)
    jax.block_until_ready((last_hidden, score))

    assert last_hidden.shape == (BATCH, HIDDEN)
    assert score.shape == (BATCH, NUM_LABELS)
    assert jnp.all(jnp.isfinite(last_hidden)) and jnp.all(jnp.isfinite(score))
    print("KERNEL_OK")
</pallas_src>

<mosaic_0001>
module attributes {stable_mosaic.version = 11 : i64} {
  func.func @_encoder_layer_kernel(%arg0: i32, %arg1: memref<8x64xf32, #tpu.memory_space<vmem>>, %arg2: memref<1x8x8xf32, #tpu.memory_space<vmem>>, %arg3: memref<64x192xbf16, #tpu.memory_space<vmem>>, %arg4: memref<1x192xf32, #tpu.memory_space<vmem>>, %arg5: memref<64x64xbf16, #tpu.memory_space<vmem>>, %arg6: memref<1x64xf32, #tpu.memory_space<vmem>>, %arg7: memref<1x64xf32, #tpu.memory_space<vmem>>, %arg8: memref<1x64xf32, #tpu.memory_space<vmem>>, %arg9: memref<64x128xbf16, #tpu.memory_space<vmem>>, %arg10: memref<1x128xf32, #tpu.memory_space<vmem>>, %arg11: memref<128x64xbf16, #tpu.memory_space<vmem>>, %arg12: memref<1x64xf32, #tpu.memory_space<vmem>>, %arg13: memref<1x64xf32, #tpu.memory_space<vmem>>, %arg14: memref<1x64xf32, #tpu.memory_space<vmem>>, %arg15: memref<8x64xf32, #tpu.memory_space<vmem>>, %arg16: memref<8x64xf32, #tpu.memory_space<vmem>>) attributes {dimension_semantics = [#tpu.dimension_semantics<parallel>], iteration_bounds = array<i64: 2>, scalar_prefetch = 0 : i64, scratch_operands = 1 : i64, tpu.core_type = #tpu.core_type<tc>, window_params = [{transform_indices = @transform_0, window_bounds = array<i64: 8, 64>}, {transform_indices = @transform_1, window_bounds = array<i64: 1, 8, 8>}, {pipeline_mode = #tpu.pipeline_mode<synchronous>, transform_indices = @transform_2, window_bounds = array<i64: 64, 192>}, {pipeline_mode = #tpu.pipeline_mode<synchronous>, transform_indices = @transform_3, window_bounds = array<i64: 1, 192>}, {pipeline_mode = #tpu.pipeline_mode<synchronous>, transform_indices = @transform_4, window_bounds = array<i64: 64, 64>}, {pipeline_mode = #tpu.pipeline_mode<synchronous>, transform_indices = @transform_5, window_bounds = array<i64: 1, 64>}, {pipeline_mode = #tpu.pipeline_mode<synchronous>, transform_indices = @transform_6, window_bounds = array<i64: 1, 64>}, {pipeline_mode = #tpu.pipeline_mode<synchronous>, transform_indices = @transform_7, window_bounds = array<i64: 1, 64>}, {pipeline_mode = #tpu.pipeline_mode<synchronous>, transform_indices = @transform_8, window_bounds = array<i64: 64, 128>}, {pipeline_mode = #tpu.pipeline_mode<synchronous>, transform_indices = @transform_9, window_bounds = array<i64: 1, 128>}, {pipeline_mode = #tpu.pipeline_mode<synchronous>, transform_indices = @transform_10, window_bounds = array<i64: 128, 64>}, {pipeline_mode = #tpu.pipeline_mode<synchronous>, transform_indices = @transform_11, window_bounds = array<i64: 1, 64>}, {pipeline_mode = #tpu.pipeline_mode<synchronous>, transform_indices = @transform_12, window_bounds = array<i64: 1, 64>}, {pipeline_mode = #tpu.pipeline_mode<synchronous>, transform_indices = @transform_13, window_bounds = array<i64: 1, 64>}, {transform_indices = @transform_14, window_bounds = array<i64: 8, 64>}]} {
    %c0 = arith.constant 0 : index
    %c0_0 = arith.constant 0 : index
    %0 = vector.load %arg1[%c0, %c0_0] : memref<8x64xf32, #tpu.memory_space<vmem>>, vector<8x64xf32>
    %1 = arith.truncf %0 : vector<8x64xf32> to vector<8x64xbf16>
    %c0_1 = arith.constant 0 : index
    %c0_2 = arith.constant 0 : index
    %c0_3 = arith.constant 0 : index
    %2 = vector.load %arg2[%c0_1, %c0_2, %c0_3] : memref<1x8x8xf32, #tpu.memory_space<vmem>>, vector<1x8x8xf32>
    %3 = vector.shape_cast %2 : vector<1x8x8xf32> to vector<8x8xf32>
    %c0_4 = arith.constant 0 : index
    %c0_5 = arith.constant 0 : index
    %4 = vector.load %arg3[%c0_4, %c0_5] : memref<64x192xbf16, #tpu.memory_space<vmem>>, vector<64x192xbf16>
    %cst = arith.constant dense<0.000000e+00> : vector<8x192xf32>
    %5 = tpu.matmul %1, %4, %cst {dimension_numbers = #tpu.dot_dimension_numbers<[1], [0], [0], [1], [0, 0, 1, 1], [], []>} : vector<8x64xbf16>, vector<64x192xbf16>, vector<8x192xf32> -> vector<8x192xf32>
    %c0_6 = arith.constant 0 : index
    %c0_7 = arith.constant 0 : index
    %6 = vector.load %arg4[%c0_6, %c0_7] : memref<1x192xf32, #tpu.memory_space<vmem>>, vector<1x192xf32>
    %7 = vector.broadcast %6 : vector<1x192xf32> to vector<8x192xf32>
    %8 = arith.addf %5, %7 : vector<8x192xf32>
    %9 = vector.extract_strided_slice %8 {offsets = [0, 0], sizes = [8, 16], strides = [1, 1]} : vector<8x192xf32> to vector<8x16xf32>
    %10 = arith.truncf %9 : vector<8x16xf32> to vector<8x16xbf16>
    %11 = vector.extract_strided_slice %8 {offsets = [0, 64], sizes = [8, 16], strides = [1, 1]} : vector<8x192xf32> to vector<8x16xf32>
    %12 = arith.truncf %11 : vector<8x16xf32> to vector<8x16xbf16>
    %13 = vector.extract_strided_slice %8 {offsets = [0, 128], sizes = [8, 16], strides = [1, 1]} : vector<8x192xf32> to vector<8x16xf32>
    %14 = arith.truncf %13 : vector<8x16xf32> to vector<8x16xbf16>
    %cst_8 = arith.constant dense<0.000000e+00> : vector<8x8xf32>
    %15 = tpu.matmul %10, %12, %cst_8 {dimension_numbers = #tpu.dot_dimension_numbers<[1], [1], [0], [0], [0, 0, 1, 0], [], []>} : vector<8x16xbf16>, vector<8x16xbf16>, vector<8x8xf32> -> vector<8x8xf32>
    %cst_9 = arith.constant 2.500000e-01 : f32
    %16 = vector.broadcast %cst_9 : f32 to vector<8x8xf32>
    %17 = arith.mulf %15, %16 : vector<8x8xf32>
    %18 = arith.addf %17, %3 : vector<8x8xf32>
    %cst_10 = arith.constant dense<0xFF800000> : vector<8xf32>
    %19 = vector.multi_reduction <maximumf>, %18, %cst_10 [1] : vector<8x8xf32> to vector<8xf32>
    %20 = vector.shape_cast %19 : vector<8xf32> to vector<8x1xf32>
    %21 = vector.broadcast %20 : vector<8x1xf32> to vector<8x8xf32>
    %22 = arith.subf %18, %21 : vector<8x8xf32>
    %23 = math.exp %22 : vector<8x8xf32>
    %cst_11 = arith.constant dense<0.000000e+00> : vector<8xf32>
    %24 = vector.multi_reduction <add>, %23, %cst_11 [1] : vector<8x8xf32> to vector<8xf32>
    %25 = vector.shape_cast %24 : vector<8xf32> to vector<8x1xf32>
    %26 = tpu.reciprocal %25 {approx = true} : vector<8x1xf32> -> vector<8x1xf32>
    %27 = vector.broadcast %26 : vector<8x1xf32> to vector<8x8xf32>
    %28 = arith.mulf %23, %27 : vector<8x8xf32>
    %29 = arith.truncf %28 : vector<8x8xf32> to vector<8x8xbf16>
    %cst_12 = arith.constant dense<0.000000e+00> : vector<8x16xf32>
    %30 = tpu.matmul %29, %14, %cst_12 {dimension_numbers = #tpu.dot_dimension_numbers<[1], [0], [0], [1], [0, 0, 1, 1], [], []>} : vector<8x8xbf16>, vector<8x16xbf16>, vector<8x16xf32> -> vector<8x16xf32>
    %c0_13 = arith.constant 0 : index
    %c0_14 = arith.constant 0 : index
    %31 = vector.load %arg16[%c0_13, %c0_14] : memref<8x64xf32, #tpu.memory_space<vmem>>, vector<8x16xf32>
    tpu.vector_store %arg16[%c0_13, %c0_14], %30 {strides = array<i32>} : memref<8x64xf32, #tpu.memory_space<vmem>>, vector<8x16xf32>,
    %32 = vector.extract_strided_slice %8 {offsets = [0, 16], sizes = [8, 16], strides = [1, 1]} : vector<8x192xf32> to vector<8x16xf32>
    %33 = arith.truncf %32 : vector<8x16xf32> to vector<8x16xbf16>
    %34 = vector.extract_strided_slice %8 {offsets = [0, 80], sizes = [8, 16], strides = [1, 1]} : vector<8x192xf32> to vector<8x16xf32>
    %35 = arith.truncf %34 : vector<8x16xf32> to vector<8x16xbf16>
    %36 = vector.extract_strided_slice %8 {offsets = [0, 144], sizes = [8, 16], strides = [1, 1]} : vector<8x192xf32> to vector<8x16xf32>
    %37 = arith.truncf %36 : vector<8x16xf32> to vector<8x16xbf16>
    %cst_15 = arith.constant dense<0.000000e+00> : vector<8x8xf32>
    %38 = tpu.matmul %33, %35, %cst_15 {dimension_numbers = #tpu.dot_dimension_numbers<[1], [1], [0], [0], [0, 0, 1, 0], [], []>} : vector<8x16xbf16>, vector<8x16xbf16>, vector<8x8xf32> -> vector<8x8xf32>
    %cst_16 = arith.constant 2.500000e-01 : f32
    %39 = vector.broadcast %cst_16 : f32 to vector<8x8xf32>
    %40 = arith.mulf %38, %39 : vector<8x8xf32>
    %41 = arith.addf %40, %3 : vector<8x8xf32>
    %cst_17 = arith.constant dense<0xFF800000> : vector<8xf32>
    %42 = vector.multi_reduction <maximumf>, %41, %cst_17 [1] : vector<8x8xf32> to vector<8xf32>
    %43 = vector.shape_cast %42 : vector<8xf32> to vector<8x1xf32>
    %44 = vector.broadcast %43 : vector<8x1xf32> to vector<8x8xf32>
    %45 = arith.subf %41, %44 : vector<8x8xf32>
    %46 = math.exp %45 : vector<8x8xf32>
    %cst_18 = arith.constant dense<0.000000e+00> : vector<8xf32>
    %47 = vector.multi_reduction <add>, %46, %cst_18 [1] : vector<8x8xf32> to vector<8xf32>
    %48 = vector.shape_cast %47 : vector<8xf32> to vector<8x1xf32>
    %49 = tpu.reciprocal %48 {approx = true} : vector<8x1xf32> -> vector<8x1xf32>
    %50 = vector.broadcast %49 : vector<8x1xf32> to vector<8x8xf32>
    %51 = arith.mulf %46, %50 : vector<8x8xf32>
    %52 = arith.truncf %51 : vector<8x8xf32> to vector<8x8xbf16>
    %cst_19 = arith.constant dense<0.000000e+00> : vector<8x16xf32>
    %53 = tpu.matmul %52, %37, %cst_19 {dimension_numbers = #tpu.dot_dimension_numbers<[1], [0], [0], [1], [0, 0, 1, 1], [], []>} : vector<8x8xbf16>, vector<8x16xbf16>, vector<8x16xf32> -> vector<8x16xf32>
    %c0_20 = arith.constant 0 : index
    %c16 = arith.constant 16 : index
    %54 = vector.load %arg16[%c0_20, %c16] : memref<8x64xf32, #tpu.memory_space<vmem>>, vector<8x16xf32>
    tpu.vector_store %arg16[%c0_20, %c16], %53 {strides = array<i32>} : memref<8x64xf32, #tpu.memory_space<vmem>>, vector<8x16xf32>,
    %55 = vector.extract_strided_slice %8 {offsets = [0, 32], sizes = [8, 16], strides = [1, 1]} : vector<8x192xf32> to vector<8x16xf32>
    %56 = arith.truncf %55 : vector<8x16xf32> to vector<8x16xbf16>
    %57 = vector.extract_strided_slice %8 {offsets = [0, 96], sizes = [8, 16], strides = [1, 1]} : vector<8x192xf32> to vector<8x16xf32>
    %58 = arith.truncf %57 : vector<8x16xf32> to vector<8x16xbf16>
    %59 = vector.extract_strided_slice %8 {offsets = [0, 160], sizes = [8, 16], strides = [1, 1]} : vector<8x192xf32> to vector<8x16xf32>
    %60 = arith.truncf %59 : vector<8x16xf32> to vector<8x16xbf16>
    %cst_21 = arith.constant dense<0.000000e+00> : vector<8x8xf32>
    %61 = tpu.matmul %56, %58, %cst_21 {dimension_numbers = #tpu.dot_dimension_numbers<[1], [1], [0], [0], [0, 0, 1, 0], [], []>} : vector<8x16xbf16>, vector<8x16xbf16>, vector<8x8xf32> -> vector<8x8xf32>
    %cst_22 = arith.constant 2.500000e-01 : f32
    %62 = vector.broadcast %cst_22 : f32 to vector<8x8xf32>
    %63 = arith.mulf %61, %62 : vector<8x8xf32>
    %64 = arith.addf %63, %3 : vector<8x8xf32>
    %cst_23 = arith.constant dense<0xFF800000> : vector<8xf32>
    %65 = vector.multi_reduction <maximumf>, %64, %cst_23 [1] : vector<8x8xf32> to vector<8xf32>
    %66 = vector.shape_cast %65 : vector<8xf32> to vector<8x1xf32>
    %67 = vector.broadcast %66 : vector<8x1xf32> to vector<8x8xf32>
    %68 = arith.subf %64, %67 : vector<8x8xf32>
    %69 = math.exp %68 : vector<8x8xf32>
    %cst_24 = arith.constant dense<0.000000e+00> : vector<8xf32>
    %70 = vector.multi_reduction <add>, %69, %cst_24 [1] : vector<8x8xf32> to vector<8xf32>
    %71 = vector.shape_cast %70 : vector<8xf32> to vector<8x1xf32>
    %72 = tpu.reciprocal %71 {approx = true} : vector<8x1xf32> -> vector<8x1xf32>
    %73 = vector.broadcast %72 : vector<8x1xf32> to vector<8x8xf32>
    %74 = arith.mulf %69, %73 : vector<8x8xf32>
    %75 = arith.truncf %74 : vector<8x8xf32> to vector<8x8xbf16>
    %cst_25 = arith.constant dense<0.000000e+00> : vector<8x16xf32>
    %76 = tpu.matmul %75, %60, %cst_25 {dimension_numbers = #tpu.dot_dimension_numbers<[1], [0], [0], [1], [0, 0, 1, 1], [], []>} : vector<8x8xbf16>, vector<8x16xbf16>, vector<8x16xf32> -> vector<8x16xf32>
    %c0_26 = arith.constant 0 : index
    %c32 = arith.constant 32 : index
    %77 = vector.load %arg16[%c0_26, %c32] : memref<8x64xf32, #tpu.memory_space<vmem>>, vector<8x16xf32>
    tpu.vector_store %arg16[%c0_26, %c32], %76 {strides = array<i32>} : memref<8x64xf32, #tpu.memory_space<vmem>>, vector<8x16xf32>,
    %78 = vector.extract_strided_slice %8 {offsets = [0, 48], sizes = [8, 16], strides = [1, 1]} : vector<8x192xf32> to vector<8x16xf32>
    %79 = arith.truncf %78 : vector<8x16xf32> to vector<8x16xbf16>
    %80 = vector.extract_strided_slice %8 {offsets = [0, 112], sizes = [8, 16], strides = [1, 1]} : vector<8x192xf32> to vector<8x16xf32>
    %81 = arith.truncf %80 : vector<8x16xf32> to vector<8x16xbf16>
    %82 = vector.extract_strided_slice %8 {offsets = [0, 176], sizes = [8, 16], strides = [1, 1]} : vector<8x192xf32> to vector<8x16xf32>
    %83 = arith.truncf %82 : vector<8x16xf32> to vector<8x16xbf16>
    %cst_27 = arith.constant dense<0.000000e+00> : vector<8x8xf32>
    %84 = tpu.matmul %79, %81, %cst_27 {dimension_numbers = #tpu.dot_dimension_numbers<[1], [1], [0], [0], [0, 0, 1, 0], [], []>} : vector<8x16xbf16>, vector<8x16xbf16>, vector<8x8xf32> -> vector<8x8xf32>
    %cst_28 = arith.constant 2.500000e-01 : f32
    %85 = vector.broadcast %cst_28 : f32 to vector<8x8xf32>
    %86 = arith.mulf %84, %85 : vector<8x8xf32>
    %87 = arith.addf %86, %3 : vector<8x8xf32>
    %cst_29 = arith.constant dense<0xFF800000> : vector<8xf32>
    %88 = vector.multi_reduction <maximumf>, %87, %cst_29 [1] : vector<8x8xf32> to vector<8xf32>
    %89 = vector.shape_cast %88 : vector<8xf32> to vector<8x1xf32>
    %90 = vector.broadcast %89 : vector<8x1xf32> to vector<8x8xf32>
    %91 = arith.subf %87, %90 : vector<8x8xf32>
    %92 = math.exp %91 : vector<8x8xf32>
    %cst_30 = arith.constant dense<0.000000e+00> : vector<8xf32>
    %93 = vector.multi_reduction <add>, %92, %cst_30 [1] : vector<8x8xf32> to vector<8xf32>
    %94 = vector.shape_cast %93 : vector<8xf32> to vector<8x1xf32>
    %95 = tpu.reciprocal %94 {approx = true} : vector<8x1xf32> -> vector<8x1xf32>
    %96 = vector.broadcast %95 : vector<8x1xf32> to vector<8x8xf32>
    %97 = arith.mulf %92, %96 : vector<8x8xf32>
    %98 = arith.truncf %97 : vector<8x8xf32> to vector<8x8xbf16>
    %cst_31 = arith.constant dense<0.000000e+00> : vector<8x16xf32>
    %99 = tpu.matmul %98, %83, %cst_31 {dimension_numbers = #tpu.dot_dimension_numbers<[1], [0], [0], [1], [0, 0, 1, 1], [], []>} : vector<8x8xbf16>, vector<8x16xbf16>, vector<8x16xf32> -> vector<8x16xf32>
    %c0_32 = arith.constant 0 : index
    %c48 = arith.constant 48 : index
    %100 = vector.load %arg16[%c0_32, %c48] : memref<8x64xf32, #tpu.memory_space<vmem>>, vector<8x16xf32>
    tpu.vector_store %arg16[%c0_32, %c48], %99 {strides = array<i32>} : memref<8x64xf32, #tpu.memory_space<vmem>>, vector<8x16xf32>,
    %c0_33 = arith.constant 0 : index
    %c0_34 = arith.constant 0 : index
    %101 = vector.load %arg16[%c0_33, %c0_34] : memref<8x64xf32, #tpu.memory_space<vmem>>, vector<8x64xf32>
    %102 = arith.truncf %101 : vector<8x64xf32> to vector<8x64xbf16>
    %c0_35 = arith.constant 0 : index
    %c0_36 = arith.constant 0 : index
    %103 = vector.load %arg5[%c0_35, %c0_36] : memref<64x64xbf16, #tpu.memory_space<vmem>>, vector<64x64xbf16>
    %cst_37 = arith.constant dense<0.000000e+00> : vector<8x64xf32>
    %104 = tpu.matmul %102, %103, %cst_37 {dimension_numbers = #tpu.dot_dimension_numbers<[1], [0], [0], [1], [0, 0, 1, 1], [], []>} : vector<8x64xbf16>, vector<64x64xbf16>, vector<8x64xf32> -> vector<8x64xf32>
    %c0_38 = arith.constant 0 : index
    %c0_39 = arith.constant 0 : index
    %105 = vector.load %arg6[%c0_38, %c0_39] : memref<1x64xf32, #tpu.memory_space<vmem>>, vector<1x64xf32>
    %106 = vector.broadcast %105 : vector<1x64xf32> to vector<8x64xf32>
    %107 = arith.addf %104, %106 : vector<8x64xf32>
    %108 = arith.addf %107, %0 : vector<8x64xf32>
    %c0_40 = arith.constant 0 : index
    %c0_41 = arith.constant 0 : index
    %109 = vector.load %arg7[%c0_40, %c0_41] : memref<1x64xf32, #tpu.memory_space<vmem>>, vector<1x64xf32>
    %c0_42 = arith.constant 0 : index
    %c0_43 = arith.constant 0 : index
    %110 = vector.load %arg8[%c0_42, %c0_43] : memref<1x64xf32, #tpu.memory_space<vmem>>, vector<1x64xf32>
    %cst_44 = arith.constant dense<0.000000e+00> : vector<8xf32>
    %111 = vector.multi_reduction <add>, %108, %cst_44 [1] : vector<8x64xf32> to vector<8xf32>
    %112 = vector.shape_cast %111 : vector<8xf32> to vector<8x1xf32>
    %cst_45 = arith.constant 6.400000e+01 : f32
    %113 = vector.broadcast %cst_45 : f32 to vector<8x1xf32>
    %114 = arith.divf %112, %113 : vector<8x1xf32>
    %115 = vector.broadcast %114 : vector<8x1xf32> to vector<8x64xf32>
    %116 = arith.subf %108, %115 : vector<8x64xf32>
    %117 = arith.mulf %116, %116 : vector<8x64xf32>
    %cst_46 = arith.constant dense<0.000000e+00> : vector<8xf32>
    %118 = vector.multi_reduction <add>, %117, %cst_46 [1] : vector<8x64xf32> to vector<8xf32>
    %119 = vector.shape_cast %118 : vector<8xf32> to vector<8x1xf32>
    %cst_47 = arith.constant 6.400000e+01 : f32
    %120 = vector.broadcast %cst_47 : f32 to vector<8x1xf32>
    %121 = arith.divf %119, %120 : vector<8x1xf32>
    %122 = vector.broadcast %114 : vector<8x1xf32> to vector<8x64xf32>
    %123 = arith.subf %108, %122 : vector<8x64xf32>
    %cst_48 = arith.constant 9.99999974E-6 : f32
    %124 = vector.broadcast %cst_48 : f32 to vector<8x1xf32>
    %125 = arith.addf %121, %124 : vector<8x1xf32>
    %126 = math.rsqrt %125 : vector<8x1xf32>
    %127 = vector.broadcast %126 : vector<8x1xf32> to vector<8x64xf32>
    %128 = arith.mulf %123, %127 : vector<8x64xf32>
    %129 = vector.broadcast %109 : vector<1x64xf32> to vector<8x64xf32>
    %130 = arith.mulf %128, %129 : vector<8x64xf32>
    %131 = vector.broadcast %110 : vector<1x64xf32> to vector<8x64xf32>
    %132 = arith.addf %130, %131 : vector<8x64xf32>
    %133 = arith.truncf %132 : vector<8x64xf32> to vector<8x64xbf16>
    %c0_49 = arith.constant 0 : index
    %c0_50 = arith.constant 0 : index
    %134 = vector.load %arg9[%c0_49, %c0_50] : memref<64x128xbf16, #tpu.memory_space<vmem>>, vector<64x128xbf16>
    %cst_51 = arith.constant dense<0.000000e+00> : vector<8x128xf32>
    %135 = tpu.matmul %133, %134, %cst_51 {dimension_numbers = #tpu.dot_dimension_numbers<[1], [0], [0], [1], [0, 0, 1, 1], [], []>} : vector<8x64xbf16>, vector<64x128xbf16>, vector<8x128xf32> -> vector<8x128xf32>
    %c0_52 = arith.constant 0 : index
    %c0_53 = arith.constant 0 : index
    %136 = vector.load %arg10[%c0_52, %c0_53] : memref<1x128xf32, #tpu.memory_space<vmem>>, vector<1x128xf32>
    %137 = vector.broadcast %136 : vector<1x128xf32> to vector<8x128xf32>
    %138 = arith.addf %135, %137 : vector<8x128xf32>
    %cst_54 = arith.constant 5.000000e-01 : f32
    %139 = vector.broadcast %cst_54 : f32 to vector<8x128xf32>
    %140 = arith.mulf %139, %138 : vector<8x128xf32>
    %cst_55 = arith.constant 0.707106769 : f32
    %141 = vector.broadcast %cst_55 : f32 to vector<8x128xf32>
    %142 = arith.mulf %138, %141 : vector<8x128xf32>
    %143 = math.erf %142 : vector<8x128xf32>
    %cst_56 = arith.constant 1.000000e+00 : f32
    %144 = vector.broadcast %cst_56 : f32 to vector<8x128xf32>
    %145 = arith.addf %144, %143 : vector<8x128xf32>
    %146 = arith.mulf %140, %145 : vector<8x128xf32>
    %147 = arith.truncf %146 : vector<8x128xf32> to vector<8x128xbf16>
    %c0_57 = arith.constant 0 : index
    %c0_58 = arith.constant 0 : index
    %148 = vector.load %arg11[%c0_57, %c0_58] : memref<128x64xbf16, #tpu.memory_space<vmem>>, vector<128x64xbf16>
    %cst_59 = arith.constant dense<0.000000e+00> : vector<8x64xf32>
    %149 = tpu.matmul %147, %148, %cst_59 {dimension_numbers = #tpu.dot_dimension_numbers<[1], [0], [0], [1], [0, 0, 1, 1], [], []>} : vector<8x128xbf16>, vector<128x64xbf16>, vector<8x64xf32> -> vector<8x64xf32>
    %c0_60 = arith.constant 0 : index
    %c0_61 = arith.constant 0 : index
    %150 = vector.load %arg12[%c0_60, %c0_61] : memref<1x64xf32, #tpu.memory_space<vmem>>, vector<1x64xf32>
    %151 = vector.broadcast %150 : vector<1x64xf32> to vector<8x64xf32>
    %152 = arith.addf %149, %151 : vector<8x64xf32>
    %153 = arith.addf %152, %132 : vector<8x64xf32>
    %c0_62 = arith.constant 0 : index
    %c0_63 = arith.constant 0 : index
    %154 = vector.load %arg13[%c0_62, %c0_63] : memref<1x64xf32, #tpu.memory_space<vmem>>, vector<1x64xf32>
    %c0_64 = arith.constant 0 : index
    %c0_65 = arith.constant 0 : index
    %155 = vector.load %arg14[%c0_64, %c0_65] : memref<1x64xf32, #tpu.memory_space<vmem>>, vector<1x64xf32>
    %cst_66 = arith.constant dense<0.000000e+00> : vector<8xf32>
    %156 = vector.multi_reduction <add>, %153, %cst_66 [1] : vector<8x64xf32> to vector<8xf32>
    %157 = vector.shape_cast %156 : vector<8xf32> to vector<8x1xf32>
    %cst_67 = arith.constant 6.400000e+01 : f32
    %158 = vector.broadcast %cst_67 : f32 to vector<8x1xf32>
    %159 = arith.divf %157, %158 : vector<8x1xf32>
    %160 = vector.broadcast %159 : vector<8x1xf32> to vector<8x64xf32>
    %161 = arith.subf %153, %160 : vector<8x64xf32>
    %162 = arith.mulf %161, %161 : vector<8x64xf32>
    %cst_68 = arith.constant dense<0.000000e+00> : vector<8xf32>
    %163 = vector.multi_reduction <add>, %162, %cst_68 [1] : vector<8x64xf32> to vector<8xf32>
    %164 = vector.shape_cast %163 : vector<8xf32> to vector<8x1xf32>
    %cst_69 = arith.constant 6.400000e+01 : f32
    %165 = vector.broadcast %cst_69 : f32 to vector<8x1xf32>
    %166 = arith.divf %164, %165 : vector<8x1xf32>
    %167 = vector.broadcast %159 : vector<8x1xf32> to vector<8x64xf32>
    %168 = arith.subf %153, %167 : vector<8x64xf32>
    %cst_70 = arith.constant 9.99999974E-6 : f32
    %169 = vector.broadcast %cst_70 : f32 to vector<8x1xf32>
    %170 = arith.addf %166, %169 : vector<8x1xf32>
    %171 = math.rsqrt %170 : vector<8x1xf32>
    %172 = vector.broadcast %171 : vector<8x1xf32> to vector<8x64xf32>
    %173 = arith.mulf %168, %172 : vector<8x64xf32>
    %174 = vector.broadcast %154 : vector<1x64xf32> to vector<8x64xf32>
    %175 = arith.mulf %173, %174 : vector<8x64xf32>
    %176 = vector.broadcast %155 : vector<1x64xf32> to vector<8x64xf32>
    %177 = arith.addf %175, %176 : vector<8x64xf32>
    %c0_71 = arith.constant 0 : index
    %c0_72 = arith.constant 0 : index
    %178 = vector.load %arg15[%c0_71, %c0_72] : memref<8x64xf32, #tpu.memory_space<vmem>>, vector<8x64xf32>
    tpu.vector_store %arg15[%c0_71, %c0_72], %177 {strides = array<i32>} : memref<8x64xf32, #tpu.memory_space<vmem>>, vector<8x64xf32>,
    return
  }
  func.func @transform_0(%arg0: i32) -> (i32, i32) {
    %c0_i32 = arith.constant 0 : i32
    %c0_i32_0 = arith.constant 0 : i32
    return %arg0, %c0_i32 : i32, i32
  }
  func.func @transform_1(%arg0: i32) -> (i32, i32, i32) {
    %c0_i32 = arith.constant 0 : i32
    %c0_i32_0 = arith.constant 0 : i32
    %c0_i32_1 = arith.constant 0 : i32
    return %arg0, %c0_i32, %c0_i32_0 : i32, i32, i32
  }
  func.func @transform_2(%arg0: i32) -> (i32, i32) {
    %c0_i32 = arith.constant 0 : i32
    %c0_i32_0 = arith.constant 0 : i32
    %c0_i32_1 = arith.constant 0 : i32
    return %c0_i32, %c0_i32_0 : i32, i32
  }
  func.func @transform_3(%arg0: i32) -> (i32, i32) {
    %c0_i32 = arith.constant 0 : i32
    %c0_i32_0 = arith.constant 0 : i32
    %c0_i32_1 = arith.constant 0 : i32
    return %c0_i32, %c0_i32_0 : i32, i32
  }
  func.func @transform_4(%arg0: i32) -> (i32, i32) {
    %c0_i32 = arith.constant 0 : i32
    %c0_i32_0 = arith.constant 0 : i32
    %c0_i32_1 = arith.constant 0 : i32
    return %c0_i32, %c0_i32_0 : i32, i32
  }
  func.func @transform_5(%arg0: i32) -> (i32, i32) {
    %c0_i32 = arith.constant 0 : i32
    %c0_i32_0 = arith.constant 0 : i32
    %c0_i32_1 = arith.constant 0 : i32
    return %c0_i32, %c0_i32_0 : i32, i32
  }
  func.func @transform_6(%arg0: i32) -> (i32, i32) {
    %c0_i32 = arith.constant 0 : i32
    %c0_i32_0 = arith.constant 0 : i32
    %c0_i32_1 = arith.constant 0 : i32
    return %c0_i32, %c0_i32_0 : i32, i32
  }
  func.func @transform_7(%arg0: i32) -> (i32, i32) {
    %c0_i32 = arith.constant 0 : i32
    %c0_i32_0 = arith.constant 0 : i32
    %c0_i32_1 = arith.constant 0 : i32
    return %c0_i32, %c0_i32_0 : i32, i32
  }
  func.func @transform_8(%arg0: i32) -> (i32, i32) {
    %c0_i32 = arith.constant 0 : i32
    %c0_i32_0 = arith.constant 0 : i32
    %c0_i32_1 = arith.constant 0 : i32
    return %c0_i32, %c0_i32_0 : i32, i32
  }
  func.func @transform_9(%arg0: i32) -> (i32, i32) {
    %c0_i32 = arith.constant 0 : i32
    %c0_i32_0 = arith.constant 0 : i32
    %c0_i32_1 = arith.constant 0 : i32
    return %c0_i32, %c0_i32_0 : i32, i32
  }
  func.func @transform_10(%arg0: i32) -> (i32, i32) {
    %c0_i32 = arith.constant 0 : i32
    %c0_i32_0 = arith.constant 0 : i32
    %c0_i32_1 = arith.constant 0 : i32
    return %c0_i32, %c0_i32_0 : i32, i32
  }
  func.func @transform_11(%arg0: i32) -> (i32, i32) {
    %c0_i32 = arith.constant 0 : i32
    %c0_i32_0 = arith.constant 0 : i32
    %c0_i32_1 = arith.constant 0 : i32
    return %c0_i32, %c0_i32_0 : i32, i32
  }
  func.func @transform_12(%arg0: i32) -> (i32, i32) {
    %c0_i32 = arith.constant 0 : i32
    %c0_i32_0 = arith.constant 0 : i32
    %c0_i32_1 = arith.constant 0 : i32
    return %c0_i32, %c0_i32_0 : i32, i32
  }
  func.func @transform_13(%arg0: i32) -> (i32, i32) {
    %c0_i32 = arith.constant 0 : i32
    %c0_i32_0 = arith.constant 0 : i32
    %c0_i32_1 = arith.constant 0 : i32
    return %c0_i32, %c0_i32_0 : i32, i32
  }
  func.func @transform_14(%arg0: i32) -> (i32, i32) {
    %c0_i32 = arith.constant 0 : i32
    %c0_i32_0 = arith.constant 0 : i32
    return %arg0, %c0_i32 : i32, i32
  }
}

module attributes {stable_mosaic.version = 11 : i64} {
  func.func @_embed_ln_kernel(%arg0: i32, %arg1: memref<16x64xf32, #tpu.memory_space<vmem>>, %arg2: memref<1x64xf32, #tpu.memory_space<vmem>>, %arg3: memref<1x64xf32, #tpu.memory_space<vmem>>, %arg4: memref<16x64xf32, #tpu.memory_space<vmem>>) attributes {dimension_semantics = [#tpu.dimension_semantics<arbitrary>], iteration_bounds = array<i64: 1>, scalar_prefetch = 0 : i64, scratch_operands = 0 : i64, tpu.core_type = #tpu.core_type<tc>, window_params = [{pipeline_mode = #tpu.pipeline_mode<synchronous>, transform_indices = @transform_0, window_bounds = array<i64: 16, 64>}, {pipeline_mode = #tpu.pipeline_mode<synchronous>, transform_indices = @transform_1, window_bounds = array<i64: 1, 64>}, {pipeline_mode = #tpu.pipeline_mode<synchronous>, transform_indices = @transform_2, window_bounds = array<i64: 1, 64>}, {pipeline_mode = #tpu.pipeline_mode<synchronous>, transform_indices = @transform_3, window_bounds = array<i64: 16, 64>}]} {
    %c0 = arith.constant 0 : index
    %c0_0 = arith.constant 0 : index
    %0 = vector.load %arg1[%c0, %c0_0] : memref<16x64xf32, #tpu.memory_space<vmem>>, vector<16x64xf32>
    %c0_1 = arith.constant 0 : index
    %c0_2 = arith.constant 0 : index
    %1 = vector.load %arg2[%c0_1, %c0_2] : memref<1x64xf32, #tpu.memory_space<vmem>>, vector<1x64xf32>
    %c0_3 = arith.constant 0 : index
    %c0_4 = arith.constant 0 : index
    %2 = vector.load %arg3[%c0_3, %c0_4] : memref<1x64xf32, #tpu.memory_space<vmem>>, vector<1x64xf32>
    %cst = arith.constant dense<0.000000e+00> : vector<16xf32>
    %3 = vector.multi_reduction <add>, %0, %cst [1] : vector<16x64xf32> to vector<16xf32>
    %4 = vector.shape_cast %3 : vector<16xf32> to vector<16x1xf32>
    %cst_5 = arith.constant 6.400000e+01 : f32
    %5 = vector.broadcast %cst_5 : f32 to vector<16x1xf32>
    %6 = arith.divf %4, %5 : vector<16x1xf32>
    %7 = vector.broadcast %6 : vector<16x1xf32> to vector<16x64xf32>
    %8 = arith.subf %0, %7 : vector<16x64xf32>
    %9 = arith.mulf %8, %8 : vector<16x64xf32>
    %cst_6 = arith.constant dense<0.000000e+00> : vector<16xf32>
    %10 = vector.multi_reduction <add>, %9, %cst_6 [1] : vector<16x64xf32> to vector<16xf32>
    %11 = vector.shape_cast %10 : vector<16xf32> to vector<16x1xf32>
    %cst_7 = arith.constant 6.400000e+01 : f32
    %12 = vector.broadcast %cst_7 : f32 to vector<16x1xf32>
    %13 = arith.divf %11, %12 : vector<16x1xf32>
    %14 = vector.broadcast %6 : vector<16x1xf32> to vector<16x64xf32>
    %15 = arith.subf %0, %14 : vector<16x64xf32>
    %cst_8 = arith.constant 9.99999974E-6 : f32
    %16 = vector.broadcast %cst_8 : f32 to vector<16x1xf32>
    %17 = arith.addf %13, %16 : vector<16x1xf32>
    %18 = math.rsqrt %17 : vector<16x1xf32>
    %19 = vector.broadcast %18 : vector<16x1xf32> to vector<16x64xf32>
    %20 = arith.mulf %15, %19 : vector<16x64xf32>
    %21 = vector.broadcast %1 : vector<1x64xf32> to vector<16x64xf32>
    %22 = arith.mulf %20, %21 : vector<16x64xf32>
    %23 = vector.broadcast %2 : vector<1x64xf32> to vector<16x64xf32>
    %24 = arith.addf %22, %23 : vector<16x64xf32>
    %c0_9 = arith.constant 0 : index
    %c0_10 = arith.constant 0 : index
    %25 = vector.load %arg4[%c0_9, %c0_10] : memref<16x64xf32, #tpu.memory_space<vmem>>, vector<16x64xf32>
    tpu.vector_store %arg4[%c0_9, %c0_10], %24 {strides = array<i32>} : memref<16x64xf32, #tpu.memory_space<vmem>>, vector<16x64xf32>,
    return
  }
  func.func @transform_0(%arg0: i32) -> (i32, i32) {
    %c0_i32 = arith.constant 0 : i32
    %c0_i32_0 = arith.constant 0 : i32
    %c0_i32_1 = arith.constant 0 : i32
    return %c0_i32, %c0_i32_0 : i32, i32
  }
  func.func @transform_1(%arg0: i32) -> (i32, i32) {
    %c0_i32 = arith.constant 0 : i32
    %c0_i32_0 = arith.constant 0 : i32
    %c0_i32_1 = arith.constant 0 : i32
    return %c0_i32, %c0_i32_0 : i32, i32
  }
  func.func @transform_2(%arg0: i32) -> (i32, i32) {
    %c0_i32 = arith.constant 0 : i32
    %c0_i32_0 = arith.constant 0 : i32
    %c0_i32_1 = arith.constant 0 : i32
    return %c0_i32, %c0_i32_0 : i32, i32
  }
  func.func @transform_3(%arg0: i32) -> (i32, i32) {
    %c0_i32 = arith.constant 0 : i32
    %c0_i32_0 = arith.constant 0 : i32
    %c0_i32_1 = arith.constant 0 : i32
    return %c0_i32, %c0_i32_0 : i32, i32
  }
}

module attributes {stable_mosaic.version = 11 : i64} {
  func.func @_head_kernel(%arg0: i32, %arg1: memref<2x64xf32, #tpu.memory_space<vmem>>, %arg2: memref<64x64xbf16, #tpu.memory_space<vmem>>, %arg3: memref<1x64xf32, #tpu.memory_space<vmem>>, %arg4: memref<64x64xbf16, #tpu.memory_space<vmem>>, %arg5: memref<1x64xf32, #tpu.memory_space<vmem>>, %arg6: memref<64x3xbf16, #tpu.memory_space<vmem>>, %arg7: memref<1x3xf32, #tpu.memory_space<vmem>>, %arg8: memref<2x64xf32, #tpu.memory_space<vmem>>, %arg9: memref<2x3xf32, #tpu.memory_space<vmem>>) attributes {dimension_semantics = [#tpu.dimension_semantics<arbitrary>], iteration_bounds = array<i64: 1>, scalar_prefetch = 0 : i64, scratch_operands = 0 : i64, tpu.core_type = #tpu.core_type<tc>, window_params = [{pipeline_mode = #tpu.pipeline_mode<synchronous>, transform_indices = @transform_0, window_bounds = array<i64: 2, 64>}, {pipeline_mode = #tpu.pipeline_mode<synchronous>, transform_indices = @transform_1, window_bounds = array<i64: 64, 64>}, {pipeline_mode = #tpu.pipeline_mode<synchronous>, transform_indices = @transform_2, window_bounds = array<i64: 1, 64>}, {pipeline_mode = #tpu.pipeline_mode<synchronous>, transform_indices = @transform_3, window_bounds = array<i64: 64, 64>}, {pipeline_mode = #tpu.pipeline_mode<synchronous>, transform_indices = @transform_4, window_bounds = array<i64: 1, 64>}, {pipeline_mode = #tpu.pipeline_mode<synchronous>, transform_indices = @transform_5, window_bounds = array<i64: 64, 3>}, {pipeline_mode = #tpu.pipeline_mode<synchronous>, transform_indices = @transform_6, window_bounds = array<i64: 1, 3>}, {pipeline_mode = #tpu.pipeline_mode<synchronous>, transform_indices = @transform_7, window_bounds = array<i64: 2, 64>}, {pipeline_mode = #tpu.pipeline_mode<synchronous>, transform_indices = @transform_8, window_bounds = array<i64: 2, 3>}]} {
    %c0 = arith.constant 0 : index
    %c0_0 = arith.constant 0 : index
    %0 = vector.load %arg1[%c0, %c0_0] : memref<2x64xf32, #tpu.memory_space<vmem>>, vector<2x64xf32>
    %1 = arith.truncf %0 : vector<2x64xf32> to vector<2x64xbf16>
    %c0_1 = arith.constant 0 : index
    %c0_2 = arith.constant 0 : index
    %2 = vector.load %arg2[%c0_1, %c0_2] : memref<64x64xbf16, #tpu.memory_space<vmem>>, vector<64x64xbf16>
    %cst = arith.constant dense<0.000000e+00> : vector<2x64xf32>
    %3 = tpu.matmul %1, %2, %cst {dimension_numbers = #tpu.dot_dimension_numbers<[1], [0], [0], [1], [0, 0, 1, 1], [], []>} : vector<2x64xbf16>, vector<64x64xbf16>, vector<2x64xf32> -> vector<2x64xf32>
    %c0_3 = arith.constant 0 : index
    %c0_4 = arith.constant 0 : index
    %4 = vector.load %arg3[%c0_3, %c0_4] : memref<1x64xf32, #tpu.memory_space<vmem>>, vector<1x64xf32>
    %5 = vector.broadcast %4 : vector<1x64xf32> to vector<2x64xf32>
    %6 = arith.addf %3, %5 : vector<2x64xf32>
    %7 = math.tanh %6 : vector<2x64xf32>
    %8 = arith.truncf %7 : vector<2x64xf32> to vector<2x64xbf16>
    %c0_5 = arith.constant 0 : index
    %c0_6 = arith.constant 0 : index
    %9 = vector.load %arg4[%c0_5, %c0_6] : memref<64x64xbf16, #tpu.memory_space<vmem>>, vector<64x64xbf16>
    %cst_7 = arith.constant dense<0.000000e+00> : vector<2x64xf32>
    %10 = tpu.matmul %8, %9, %cst_7 {dimension_numbers = #tpu.dot_dimension_numbers<[1], [0], [0], [1], [0, 0, 1, 1], [], []>} : vector<2x64xbf16>, vector<64x64xbf16>, vector<2x64xf32> -> vector<2x64xf32>
    %c0_8 = arith.constant 0 : index
    %c0_9 = arith.constant 0 : index
    %11 = vector.load %arg5[%c0_8, %c0_9] : memref<1x64xf32, #tpu.memory_space<vmem>>, vector<1x64xf32>
    %12 = vector.broadcast %11 : vector<1x64xf32> to vector<2x64xf32>
    %13 = arith.addf %10, %12 : vector<2x64xf32>
    %14 = math.tanh %13 : vector<2x64xf32>
    %15 = arith.truncf %14 : vector<2x64xf32> to vector<2x64xbf16>
    %c0_10 = arith.constant 0 : index
    %c0_11 = arith.constant 0 : index
    %16 = vector.load %arg6[%c0_10, %c0_11] : memref<64x3xbf16, #tpu.memory_space<vmem>>, vector<64x3xbf16>
    %cst_12 = arith.constant dense<0.000000e+00> : vector<2x3xf32>
    %17 = tpu.matmul %15, %16, %cst_12 {dimension_numbers = #tpu.dot_dimension_numbers<[1], [0], [0], [1], [0, 0, 1, 1], [], []>} : vector<2x64xbf16>, vector<64x3xbf16>, vector<2x3xf32> -> vector<2x3xf32>
    %c0_13 = arith.constant 0 : index
    %c0_14 = arith.constant 0 : index
    %18 = vector.load %arg7[%c0_13, %c0_14] : memref<1x3xf32, #tpu.memory_space<vmem>>, vector<1x3xf32>
    %19 = vector.broadcast %18 : vector<1x3xf32> to vector<2x3xf32>
    %20 = arith.addf %17, %19 : vector<2x3xf32>
    %c0_15 = arith.constant 0 : index
    %c0_16 = arith.constant 0 : index
    %21 = vector.load %arg8[%c0_15, %c0_16] : memref<2x64xf32, #tpu.memory_space<vmem>>, vector<2x64xf32>
    tpu.vector_store %arg8[%c0_15, %c0_16], %14 {strides = array<i32>} : memref<2x64xf32, #tpu.memory_space<vmem>>, vector<2x64xf32>,
    %c0_17 = arith.constant 0 : index
    %c0_18 = arith.constant 0 : index
    %22 = vector.load %arg9[%c0_17, %c0_18] : memref<2x3xf32, #tpu.memory_space<vmem>>, vector<2x3xf32>
    tpu.vector_store %arg9[%c0_17, %c0_18], %20 {strides = array<i32>} : memref<2x3xf32, #tpu.memory_space<vmem>>, vector<2x3xf32>,
    return
  }
  func.func @transform_0(%arg0: i32) -> (i32, i32) {
    %c0_i32 = arith.constant 0 : i32
    %c0_i32_0 = arith.constant 0 : i32
    %c0_i32_1 = arith.constant 0 : i32
    return %c0_i32, %c0_i32_0 : i32, i32
  }
  func.func @transform_1(%arg0: i32) -> (i32, i32) {
    %c0_i32 = arith.constant 0 : i32
    %c0_i32_0 = arith.constant 0 : i32
    %c0_i32_1 = arith.constant 0 : i32
    return %c0_i32, %c0_i32_0 : i32, i32
  }
  func.func @transform_2(%arg0: i32) -> (i32, i32) {
    %c0_i32 = arith.constant 0 : i32
    %c0_i32_0 = arith.constant 0 : i32
    %c0_i32_1 = arith.constant 0 : i32
    return %c0_i32, %c0_i32_0 : i32, i32
  }
  func.func @transform_3(%arg0: i32) -> (i32, i32) {
    %c0_i32 = arith.constant 0 : i32
    %c0_i32_0 = arith.constant 0 : i32
    %c0_i32_1 = arith.constant 0 : i32
    return %c0_i32, %c0_i32_0 : i32, i32
  }
  func.func @transform_4(%arg0: i32) -> (i32, i32) {
    %c0_i32 = arith.constant 0 : i32
    %c0_i32_0 = arith.constant 0 : i32
    %c0_i32_1 = arith.constant 0 : i32
    return %c0_i32, %c0_i32_0 : i32, i32
  }
  func.func @transform_5(%arg0: i32) -> (i32, i32) {
    %c0_i32 = arith.constant 0 : i32
    %c0_i32_0 = arith.constant 0 : i32
    %c0_i32_1 = arith.constant 0 : i32
    return %c0_i32, %c0_i32_0 : i32, i32
  }
  func.func @transform_6(%arg0: i32) -> (i32, i32) {
    %c0_i32 = arith.constant 0 : i32
    %c0_i32_0 = arith.constant 0 : i32
    %c0_i32_1 = arith.constant 0 : i32
    return %c0_i32, %c0_i32_0 : i32, i32
  }
  func.func @transform_7(%arg0: i32) -> (i32, i32) {
    %c0_i32 = arith.constant 0 : i32
    %c0_i32_0 = arith.constant 0 : i32
    %c0_i32_1 = arith.constant 0 : i32
    return %c0_i32, %c0_i32_0 : i32, i32
  }
  func.func @transform_8(%arg0: i32) -> (i32, i32) {
    %c0_i32 = arith.constant 0 : i32
    %c0_i32_0 = arith.constant 0 : i32
    %c0_i32_1 = arith.constant 0 : i32
    return %c0_i32, %c0_i32_0 : i32, i32
  }
}

</mosaic_0001>

<llo_original>
// kernel: roberta_for_sequence_classification.4
$region0: #{roberta_for_sequence_classification.4}
  #allocation0 [shape = 'u32[]', space=smem, size = 0x4, offset = 0x4, fixed_abs, tag = 'smem constant byte address 0x4 - core index']
  #allocation1 [shape = 'u32[72,128]{1,0:T(1,128)}', space=vmem, size = 0x9000, scoped, tag = 'internal scratch']
  %s0 = inlined_call_operand.vmem [shape: f32[16,64], index: 0, kind: input, shape index: {}]
  %s1 = inlined_call_operand.vmem [shape: f32[1,64], index: 1, kind: input, shape index: {}]
  %s2 = inlined_call_operand.vmem [shape: f32[1,64], index: 2, kind: input, shape index: {}]
  %s3 = inlined_call_operand.vmem [shape: f32[16,64], index: 3, kind: output, shape index: {}]
  %s4 = sld [smem:[#allocation0]]
  $region22: #{roberta_for_sequence_classification.4} parent=0
    _
  %s6 = ssub.s32 1, %s4
  %s7 = scalar_select 0, %s6, %s4
  // Predicated region
  $region2: #{roberta_for_sequence_classification.4} parent=0 // pred_check
    _
  $region3: #{roberta_for_sequence_classification.4} parent=0 // pred_check_branch
    %9 = sbr.rel (0) target = $region5
  $region4: #{roberta_for_sequence_classification.4} parent=0 // pred_region
    _
  $region5: #{roberta_for_sequence_classification.4} parent=0 // pred_fallthru
    _
  // Predicated region
  $region6: #{roberta_for_sequence_classification.4} parent=0 // pred_check
    _
  $region7: #{roberta_for_sequence_classification.4} parent=0 // pred_check_branch
    %11 = sbr.rel (0) target = $region9
  $region8: #{roberta_for_sequence_classification.4} parent=0 // pred_region
    _
  $region9: #{roberta_for_sequence_classification.4} parent=0 // pred_fallthru
    _
  // Predicated region
  $region10: #{roberta_for_sequence_classification.4} parent=0 // pred_check
    _
  $region11: #{roberta_for_sequence_classification.4} parent=0 // pred_check_branch
    %13 = sbr.rel (0) target = $region13
  $region12: #{roberta_for_sequence_classification.4} parent=0 // pred_region
    _
  $region13: #{roberta_for_sequence_classification.4} parent=0 // pred_fallthru
    _
  %v14 = vld [vmem:[%s0] sm:$0xff]
  %v15 = vld [vmem:[%s0 + $0x8] sm:$0xff]
  %v16 = vld [vmem:[%s1] sm:$0x1]
  %v17 = vld [vmem:[%s2] sm:$0x1]
  %vm18 = vcmask 523264
  %v19 = vsel %vm18, %v14, 0.0
  %20 = vadd.xlane.f32.xlu0 %v19
  %v21 = vpop.xlane.xlu0 %20
  %v22 = vsel %vm18, %v15, 0.0
  %23 = vadd.xlane.f32.xlu0 %v22
  %v24 = vpop.xlane.xlu0 %23
  %v25 = vrcp.pop 64.0
  %v26 = vmul.f32 64.0, %v25
  %v27 = vsub.f32 1.0, %v26
  %v28 = vmul.f32 %v25, %v27
  %v29 = vadd.f32 %v25, %v28
  %vm30 = vweird.f32 %v25
  %v31 = vsel %vm30, %v25, %v29
  %v32 = vmul.f32 %v21, %v31
  %v33 = vmul.f32 %v24, %v31
  %v34 = vsub.f32 %v14, %v32
  %v35 = vsub.f32 %v15, %v33
  %v36 = vmul.f32 %v34, %v34
  %v37 = vmul.f32 %v35, %v35
  %v38 = vsel %vm18, %v36, 0.0
  %39 = vadd.xlane.f32.xlu0 %v38
  %v40 = vpop.xlane.xlu0 %39
  %v41 = vsel %vm18, %v37, 0.0
  %42 = vadd.xlane.f32.xlu0 %v41
  %v43 = vpop.xlane.xlu0 %42
  %v44 = vmul.f32 %v40, %v31
  %v45 = vmul.f32 %v43, %v31
  %v46 = vadd.f32 %v44, 1e-05
  %v47 = vadd.f32 %v45, 1e-05
  %v48 = vrsqrt.pop %v46
  %v49 = vmul.f32 %v48, %v46
  %v50 = vmul.f32 %v49, %v48
  %v51 = vmul.f32 0.5, %v50
  %v52 = vsub.f32 1.5, %v51
  %v53 = vmul.f32 %v48, %v52
  %vm54 = vweird.f32 %v46
  %vm55 = vweird.f32 %v48
  %vm56 = vmor %vm54, %vm55
  %v57 = vsel %vm56, %v48, %v53
  %v58 = vrsqrt.pop %v47
  %v59 = vmul.f32 %v58, %v47
  %v60 = vmul.f32 %v59, %v58
  %v61 = vmul.f32 0.5, %v60
  %v62 = vsub.f32 1.5, %v61
  %v63 = vmul.f32 %v58, %v62
  %vm64 = vweird.f32 %v47
  %vm65 = vweird.f32 %v58
  %vm66 = vmor %vm64, %vm65
  %v67 = vsel %vm66, %v58, %v63
  %v68 = vmul.f32 %v34, %v57
  %v69 = vmul.f32 %v35, %v67
  %v71 = vperm.slane %v16, 0
  %v73 = vmul.f32 %v68, %v71
  %v74 = vmul.f32 %v69, %v71
  %v76 = vperm.slane %v17, 0
  %v78 = vadd.f32 %v73, %v76
  %v79 = vadd.f32 %v74, %v76
  %80 = vst.msk [vmem:[%s3] sm:$0xff] %vm18, %v78
  %81 = vst.msk [vmem:[%s3 + $0x8] sm:$0xff] %vm18, %v79
  // Predicated region
  $region14: #{roberta_for_sequence_classification.4} parent=0 // pred_check
    _
  $region15: #{roberta_for_sequence_classification.4} parent=0 // pred_check_branch
    %83 = sbr.rel (0) target = $region17
  $region16: #{roberta_for_sequence_classification.4} parent=0 // pred_region
    _
  $region17: #{roberta_for_sequence_classification.4} parent=0 // pred_fallthru
    _
  // Predicated region
  $region18: #{roberta_for_sequence_classification.4} parent=0 // pred_check
    _
  $region19: #{roberta_for_sequence_classification.4} parent=0 // pred_check_branch
    %85 = sbr.rel (0) target = $region21
  $region20: #{roberta_for_sequence_classification.4} parent=0 // pred_region
    _
  $region21: #{roberta_for_sequence_classification.4} parent=0 // pred_fallthru
    _

// kernel: roberta_for_sequence_classification.7
$region0: #{roberta_for_sequence_classification.7}
  #allocation0 [shape = 'u32[]', space=smem, size = 0x4, offset = 0x4, fixed_abs, tag = 'smem constant byte address 0x4 - core index']
  #allocation1 [shape = 'u32[72,128]{1,0:T(1,128)}', space=vmem, size = 0x9000, scoped, tag = 'internal scratch']
  %s0 = inlined_call_operand.vmem [shape: f32[2,64], index: 0, kind: input, shape index: {}]
  %s1 = inlined_call_operand.vmem [shape: bf16[64,64], index: 1, kind: input, shape index: {}]
  %s2 = inlined_call_operand.vmem [shape: f32[1,64], index: 2, kind: input, shape index: {}]
  %s3 = inlined_call_operand.vmem [shape: bf16[64,64], index: 3, kind: input, shape index: {}]
  %s4 = inlined_call_operand.vmem [shape: f32[1,64], index: 4, kind: input, shape index: {}]
  %s5 = inlined_call_operand.vmem [shape: bf16[64,3], index: 5, kind: input, shape index: {}]
  %s6 = inlined_call_operand.vmem [shape: f32[1,3], index: 6, kind: input, shape index: {}]
  %s7 = inlined_call_operand.hbm [shape: f32[2,64], index: 7, kind: output, shape index: {0}]
  %s8 = inlined_call_operand.hbm [shape: f32[2,3], index: 8, kind: output, shape index: {1}]
  %9 = xla_tuple %s7, %s8
  %s10 = sld [smem:[#allocation0]]
  $region46: #{roberta_for_sequence_classification.7} parent=0
    _
  %s12 = ssub.s32 1, %s10
  %s13 = scalar_select 0, %s12, %s10
  $region1: #{roberta_for_sequence_classification.7} parent=0
    #allocation2 [shape = 'u8[1024]{0}', space=vmem, size = 0x400, scoped, tag = 'output window, operand 0, single buffered']
    #allocation3 [shape = 's32[1]{0}', space=sflag, size = 0x4, scoped, tag = 'scoped memory for roberta_for_sequence_classification.7']
    #allocation4 [shape = 'u8[1024]{0}', space=vmem, size = 0x400, scoped, tag = 'output window, operand 1, single buffered']
    #allocation5 [shape = 's32[1]{0}', space=sflag, size = 0x4, scoped, tag = 'scoped memory for roberta_for_sequence_classification.7']
    %14 = vsyncpa [#allocation3], 0
    %15 = vsyncpa [#allocation5], 0
    // Predicated region
    $region2: #{roberta_for_sequence_classification.7} parent=1 // pred_check
      _
    $region3: #{roberta_for_sequence_classification.7} parent=1 // pred_check_branch
      %17 = sbr.rel (0) target = $region5
    $region4: #{roberta_for_sequence_classification.7} parent=1 // pred_region
      _
    $region5: #{roberta_for_sequence_classification.7} parent=1 // pred_fallthru
      _
    // Predicated region
    $region6: #{roberta_for_sequence_classification.7} parent=1 // pred_check
      _
    $region7: #{roberta_for_sequence_classification.7} parent=1 // pred_check_branch
      %19 = sbr.rel (0) target = $region9
    $region8: #{roberta_for_sequence_classification.7} parent=1 // pred_region
      _
    $region9: #{roberta_for_sequence_classification.7} parent=1 // pred_fallthru
      _
    // Predicated region
    $region10: #{roberta_for_sequence_classification.7} parent=1 // pred_check
      _
    $region11: #{roberta_for_sequence_classification.7} parent=1 // pred_check_branch
      %21 = sbr.rel (0) target = $region13
    $region12: #{roberta_for_sequence_classification.7} parent=1 // pred_region
      _
    $region13: #{roberta_for_sequence_classification.7} parent=1 // pred_fallthru
      _
    // Predicated region
    $region14: #{roberta_for_sequence_classification.7} parent=1 // pred_check
      _
    $region15: #{roberta_for_sequence_classification.7} parent=1 // pred_check_branch
      %23 = sbr.rel (0) target = $region17
    $region16: #{roberta_for_sequence_classification.7} parent=1 // pred_region
      _
    $region17: #{roberta_for_sequence_classification.7} parent=1 // pred_fallthru
      _
    // Predicated region
    $region18: #{roberta_for_sequence_classification.7} parent=1 // pred_check
      _
    $region19: #{roberta_for_sequence_classification.7} parent=1 // pred_check_branch
      %25 = sbr.rel (0) target = $region21
    $region20: #{roberta_for_sequence_classification.7} parent=1 // pred_region
      _
    $region21: #{roberta_for_sequence_classification.7} parent=1 // pred_fallthru
      _
    // Predicated region
    $region22: #{roberta_for_sequence_classification.7} parent=1 // pred_check
      _
    $region23: #{roberta_for_sequence_classification.7} parent=1 // pred_check_branch
      %27 = sbr.rel (0) target = $region25
    $region24: #{roberta_for_sequence_classification.7} parent=1 // pred_region
      _
    $region25: #{roberta_for_sequence_classification.7} parent=1 // pred_fallthru
      _
    // Predicated region
    $region26: #{roberta_for_sequence_classification.7} parent=1 // pred_check
      _
    $region27: #{roberta_for_sequence_classification.7} parent=1 // pred_check_branch
      %29 = sbr.rel (0) target = $region29
    $region28: #{roberta_for_sequence_classification.7} parent=1 // pred_region
      _
    $region29: #{roberta_for_sequence_classification.7} parent=1 // pred_fallthru
      _
    %v31 = vld [vmem:[%s0] sm:$0x3]
    %v32 = vpack.c.bf16 %v31, %v31
    %v33 = vld [vmem:[%s1] sm:$0xf]
    %v34 = vld [vmem:[%s1 + $0x4] sm:$0xf]
    %v35 = vld [vmem:[%s1 + $0x8] sm:$0xf]
    %v36 = vld [vmem:[%s1 + $0xc] sm:$0xf]
    %v37 = vld [vmem:[%s1 + $0x10] sm:$0xf]
    %v38 = vld [vmem:[%s1 + $0x14] sm:$0xf]
    %v39 = vld [vmem:[%s1 + $0x18] sm:$0xf]
    %v40 = vld [vmem:[%s1 + $0x1c] sm:$0xf]
    %v41 = vld [vmem:[%s2] sm:$0x1]
    %v43 = vperm.slane %v41, 0
    %v53 = vunpack.c.l.b16 %v33
    %v54 = vunpack.c.l.b16 %v34
    %v55 = vunpack.c.l.b16 %v35
    %v56 = vunpack.c.l.b16 %v36
    %v57 = vunpack.c.l.b16 %v37
    %v58 = vunpack.c.l.b16 %v38
    %v59 = vunpack.c.l.b16 %v39
    %v60 = vunpack.c.l.b16 %v40
    %v61 = vpack.c.b16 %v54, %v53
    %v62 = vpack.c.b16 %v56, %v55
    %v63 = vpack.c.b16 %v58, %v57
    %v64 = vpack.c.b16 %v60, %v59
    %vm69 = vcmask 523264
    %v71 = vsel %vm69, %v32, 0
    %73 = vmatpush.bf16.msra.mxu0 0
    %74 = vmatpush.bf16.msra.mxu0 0
    %75 = vmatpush.bf16.msra.mxu0 0
    %76 = vmatpush.bf16.msra.mxu0 0
    %77 = vmatpush.bf16.msra.mxu0 %v64
    %78 = vmatpush.bf16.msra.mxu0 %v63
    %79 = vmatpush.bf16.msra.mxu0 %v62
    %80 = vmatpush.bf16.msra.mxu0 %v61
    %81 = vmatmul.bf16.gmra.mxu0 %v71
    %v82 = vpop.f32.mrf.mxu0
    %v83 = vadd.f32 %v43, %v82
    %v84 = vpop.f32.mrf.mxu0
    %85 = vdwg.mxu0
    %v86 = vtanh.pop %v83
    %v87 = vpack.c.bf16 %v86, %v86
    %v88 = vld [vmem:[%s3] sm:$0xf]
    %v89 = vld [vmem:[%s3 + $0x4] sm:$0xf]
    %v90 = vld [vmem:[%s3 + $0x8] sm:$0xf]
    %v91 = vld [vmem:[%s3 + $0xc] sm:$0xf]
    %v92 = vld [vmem:[%s3 + $0x10] sm:$0xf]
    %v93 = vld [vmem:[%s3 + $0x14] sm:$0xf]
    %v94 = vld [vmem:[%s3 + $0x18] sm:$0xf]
    %v95 = vld [vmem:[%s3 + $0x1c] sm:$0xf]
    %v96 = vld [vmem:[%s4] sm:$0x1]
    %v98 = vperm.slane %v96, 0
    %v108 = vunpack.c.l.b16 %v88
    %v109 = vunpack.c.l.b16 %v89
    %v110 = vunpack.c.l.b16 %v90
    %v111 = vunpack.c.l.b16 %v91
    %v112 = vunpack.c.l.b16 %v92
    %v113 = vunpack.c.l.b16 %v93
    %v114 = vunpack.c.l.b16 %v94
    %v115 = vunpack.c.l.b16 %v95
    %v116 = vpack.c.b16 %v109, %v108
    %v117 = vpack.c.b16 %v111, %v110
    %v118 = vpack.c.b16 %v113, %v112
    %v119 = vpack.c.b16 %v115, %v114
    %v125 = vsel %vm69, %v87, 0
    %127 = vmatpush.bf16.msra.mxu0 0
    %128 = vmatpush.bf16.msra.mxu0 0
    %129 = vmatpush.bf16.msra.mxu0 0
    %130 = vmatpush.bf16.msra.mxu0 0
    %131 = vmatpush.bf16.msra.mxu0 %v119
    %132 = vmatpush.bf16.msra.mxu0 %v118
    %133 = vmatpush.bf16.msra.mxu0 %v117
    %134 = vmatpush.bf16.msra.mxu0 %v116
    %135 = vmatmul.bf16.gmra.mxu0 %v125
    %v136 = vpop.f32.mrf.mxu0
    %v137 = vadd.f32 %v98, %v136
    %v138 = vpop.f32.mrf.mxu0
    %139 = vdwg.mxu0
    %v140 = vtanh.pop %v137
    %v141 = vpack.c.bf16 %v140, %v140
    %v142 = vld [vmem:[%s5] sm:$0xf]
    %v143 = vld [vmem:[%s5 + $0x4] sm:$0xf]
    %v144 = vld [vmem:[%s5 + $0x8] sm:$0xf]
    %v145 = vld [vmem:[%s5 + $0xc] sm:$0xf]
    %v146 = vld [vmem:[%s5 + $0x10] sm:$0xf]
    %v147 = vld [vmem:[%s5 + $0x14] sm:$0xf]
    %v148 = vld [vmem:[%s5 + $0x18] sm:$0xf]
    %v149 = vld [vmem:[%s5 + $0x1c] sm:$0xf]
    %v150 = vld [vmem:[%s6] sm:$0x1]
    %v152 = vperm.slane %v150, 0
    %v162 = vunpack.c.l.b16 %v142
    %v163 = vunpack.c.l.b16 %v143
    %v164 = vunpack.c.l.b16 %v144
    %v165 = vunpack.c.l.b16 %v145
    %v166 = vunpack.c.l.b16 %v146
    %v167 = vunpack.c.l.b16 %v147
    %v168 = vunpack.c.l.b16 %v148
    %v169 = vunpack.c.l.b16 %v149
    %v170 = vpack.c.b16 %v163, %v162
    %v171 = vpack.c.b16 %v165, %v164
    %v172 = vpack.c.b16 %v167, %v166
    %v173 = vpack.c.b16 %v169, %v168
    %v179 = vsel %vm69, %v141, 0
    %181 = vmatpush.bf16.msra.mxu0 0
    %182 = vmatpush.bf16.msra.mxu0 0
    %183 = vmatpush.bf16.msra.mxu0 0
    %184 = vmatpush.bf16.msra.mxu0 0
    %185 = vmatpush.bf16.msra.mxu0 %v173
    %186 = vmatpush.bf16.msra.mxu0 %v172
    %187 = vmatpush.bf16.msra.mxu0 %v171
    %188 = vmatpush.bf16.msra.mxu0 %v170
    %189 = vmatmul.bf16.gmra.mxu0 %v179
    %v190 = vpop.f32.mrf.mxu0
    %v191 = vadd.f32 %v152, %v190
    %v192 = vpop.f32.mrf.mxu0
    %193 = vdwg.mxu0
    %vm194 = vcmask 517120
    %195 = vst.msk [vmem:[#allocation2] sm:$0x3] %vm194, %v140
    %vm196 = vcmask 17408
    %197 = vst.msk [vmem:[#allocation4] sm:$0x3] %vm196, %v191
    // Predicated region
    $region30: #{roberta_for_sequence_classification.7} parent=1 // pred_check
      _
    $region31: #{roberta_for_sequence_classification.7} parent=1 // pred_check_branch
      %199 = sbr.rel (0) target = $region33
    $region32: #{roberta_for_sequence_classification.7} parent=1 // pred_region
      %201 = vsyncadd [#allocation3], 0
      %s203 = sshll.u32 [#allocation2], 4
      %s204 = int_to_ptr.vmem [resolvable:$true] %s203
      %s205 = sshll.u32 %s7, 4
      %s206 = int_to_ptr.hbm [resolvable:$true] %s205
      %208 = dma.vmem_to_hbm [thread:$0]  %s204, 32, %s206, [#allocation3]
    $region33: #{roberta_for_sequence_classification.7} parent=1 // pred_fallthru
      _
    // Predicated region
    $region34: #{roberta_for_sequence_classification.7} parent=1 // pred_check
      _
    $region35: #{roberta_for_sequence_classification.7} parent=1 // pred_check_branch
      %210 = sbr.rel (0) target = $region37
    $region36: #{roberta_for_sequence_classification.7} parent=1 // pred_region
      %212 = vsyncadd [#allocation5], 0
      %s214 = sshll.u32 [#allocation4], 4
      %s215 = int_to_ptr.vmem [resolvable:$true] %s214
      %s216 = sshll.u32 %s8, 4
      %s217 = int_to_ptr.hbm [resolvable:$true] %s216
      %219 = dma.vmem_to_hbm [thread:$0]  %s215, 32, %s217, [#allocation5]
    $region37: #{roberta_for_sequence_classification.7} parent=1 // pred_fallthru
      _
    // Predicated region
    $region38: #{roberta_for_sequence_classification.7} parent=1 // pred_check
      _
    $region39: #{roberta_for_sequence_classification.7} parent=1 // pred_check_branch
      %221 = sbr.rel (0) target = $region41
    $region40: #{roberta_for_sequence_classification.7} parent=1 // pred_region
      %223 = dma.done [#allocation3], 32
    $region41: #{roberta_for_sequence_classification.7} parent=1 // pred_fallthru
      _
    // Predicated region
    $region42: #{roberta_for_sequence_classification.7} parent=1 // pred_check
      _
    $region43: #{roberta_for_sequence_classification.7} parent=1 // pred_check_branch
      %225 = sbr.rel (0) target = $region45
    $region44: #{roberta_for_sequence_classification.7} parent=1 // pred_region
      %227 = dma.done [#allocation5], 32
    $region45: #{roberta_for_sequence_classification.7} parent=1 // pred_fallthru
      _
    %228 = vsyncpa [#allocation3], 1
    %229 = vsyncpa [#allocation5], 1

// kernel: roberta_for_sequence_classification.5
$region0: #{roberta_for_sequence_classification.5}
  #allocation0 [shape = 'u32[]', space=smem, size = 0x4, offset = 0x4, fixed_abs, tag = 'smem constant byte address 0x4 - core index']
  #allocation1 [shape = 'u32[72,128]{1,0:T(1,128)}', space=vmem, size = 0x9000, scoped, tag = 'internal scratch']
  #allocation2 [shape = 'f32[8,64]{1,0:T(8,128)}', space=vmem, size = 0x1000, scoped, tag = 'scratch operand']
  %s0 = inlined_call_operand.vmem [shape: f32[16,64], index: 0, kind: input, shape index: {}]
  %s1 = inlined_call_operand.vmem [shape: f32[2,8,8], index: 1, kind: input, shape index: {}]
  %s2 = inlined_call_operand.vmem [shape: bf16[64,192], index: 2, kind: input, shape index: {}]
  %s3 = inlined_call_operand.vmem [shape: f32[1,192], index: 3, kind: input, shape index: {}]
  %s4 = inlined_call_operand.vmem [shape: bf16[64,64], index: 4, kind: input, shape index: {}]
  %s5 = inlined_call_operand.vmem [shape: f32[1,64], index: 5, kind: input, shape index: {}]
  %s6 = inlined_call_operand.vmem [shape: f32[1,64], index: 6, kind: input, shape index: {}]
  %s7 = inlined_call_operand.vmem [shape: f32[1,64], index: 7, kind: input, shape index: {}]
  %s8 = inlined_call_operand.vmem [shape: bf16[64,128], index: 8, kind: input, shape index: {}]
  %s9 = inlined_call_operand.vmem [shape: f32[1,128], index: 9, kind: input, shape index: {}]
  %s10 = inlined_call_operand.vmem [shape: bf16[128,64], index: 10, kind: input, shape index: {}]
  %s11 = inlined_call_operand.vmem [shape: f32[1,64], index: 11, kind: input, shape index: {}]
  %s12 = inlined_call_operand.vmem [shape: f32[1,64], index: 12, kind: input, shape index: {}]
  %s13 = inlined_call_operand.vmem [shape: f32[1,64], index: 13, kind: input, shape index: {}]
  %s14 = inlined_call_operand.vmem [shape: f32[16,64], index: 14, kind: output, shape index: {}]
  %s15 = sld [smem:[#allocation0]]
  $region89: #{roberta_for_sequence_classification.5} parent=0
    _
  %s17 = ssub.s32 1, %s15
  %s18 = scalar_select 0, %s17, %s15
  loop: start=0, step=1, limit=4
  $region2: #{roberta_for_sequence_classification.5} parent=0 // loop_pre_header
    _
  $region3: #{roberta_for_sequence_classification.5} parent=0 // loop_header
    %s20 = sphi 0, %s24
    %p21 = scmp.ge.s32.totalorder %s20, 4
    %s30 = sphi 0, %s32
    %s33 = sphi 0, %s30
    %s34 = sphi 0, %s33
    %s50 = sphi 0, %s34
    %s56 = sphi 0, %s58
    %s59 = sphi 0, %s56
    %s60 = sphi 0, %s59
    %s76 = sphi 0, %s60
    %s80 = sphi 0, %s80
    %s82 = sphi 0, %s80
    %s83 = sphi 0, %s82
    %s97 = sphi 0, %s83
    %s101 = sphi 0, %s101
    %s103 = sphi 0, %s101
    %s104 = sphi 0, %s103
    %s118 = sphi 0, %s104
    %s122 = sphi 0, %s122
    %s124 = sphi 0, %s122
    %s125 = sphi 0, %s124
    %s139 = sphi 0, %s125
    %s143 = sphi 0, %s143
    %s145 = sphi 0, %s143
    %s146 = sphi 0, %s145
    %s160 = sphi 0, %s146
    %s164 = sphi 0, %s164
    %s166 = sphi 0, %s164
    %s167 = sphi 0, %s166
    %s181 = sphi 0, %s167
    %s185 = sphi 0, %s185
    %s187 = sphi 0, %s185
    %s188 = sphi 0, %s187
    %s202 = sphi 0, %s188
    %s206 = sphi 0, %s206
    %s208 = sphi 0, %s206
    %s209 = sphi 0, %s208
    %s223 = sphi 0, %s209
    %s227 = sphi 0, %s227
    %s229 = sphi 0, %s227
    %s230 = sphi 0, %s229
    %s244 = sphi 0, %s230
    %s248 = sphi 0, %s248
    %s250 = sphi 0, %s248
    %s251 = sphi 0, %s250
    %s265 = sphi 0, %s251
    %s269 = sphi 0, %s269
    %s271 = sphi 0, %s269
    %s272 = sphi 0, %s271
    %s286 = sphi 0, %s272
    %s290 = sphi 0, %s290
    %s292 = sphi 0, %s290
    %s293 = sphi 0, %s292
    %s307 = sphi 0, %s293
    %s311 = sphi 0, %s311
    %s313 = sphi 0, %s311
    %s314 = sphi 0, %s313
    %s328 = sphi 0, %s314
    %s334 = sphi 0, %s336
    %s337 = sphi 0, %s334
    %s338 = sphi 0, %s337
    %s354 = sphi 0, %s338
  $region4: #{roberta_for_sequence_classification.5} parent=0 // loop_header_branch
    %23 = sbr.rel (%p21) target = $region8
  $region5: #{roberta_for_sequence_classification.5} parent=0 // loop_body
    %s25 = ssub.s32 %s20, 1
    %s26 = ssub.s32 %s20, 2
    %s27 = sadd.s32 %s20, 1
    %s28 = ssub.s32 %s20, %s27
    %p29 = scmp.eq.s32.totalorder %s28, 0
    %s31 = sadd.s32 %s30, 1
    %s32 = scalar_select %p29, %s30, %s31
    %p35 = pneg %p29
    %p36 = scmp.eq.s32.totalorder %s20, 1
    %p37 = por %p35, %p36
    %p38 = scmp.ne.s32.totalorder %s30, %s33
    %p39 = scmp.eq.s32.totalorder %s20, 0
    %p40 = por %p38, %p39
    %p41 = scmp.ne.s32.totalorder %s30, %s33
    %p42 = scmp.eq.s32.totalorder %s25, 1
    %p43 = por %p41, %p42
    %p44 = scmp.ne.s32.totalorder %s33, %s34
    %p45 = scmp.eq.s32.totalorder %s25, 0
    %p46 = por %p44, %p45
    %p47 = scmp.ne.s32.totalorder %s33, %s34
    %p48 = scmp.eq.s32.totalorder %s26, 1
    %p49 = por %p47, %p48
    %p51 = scmp.ne.s32.totalorder %s34, %s50
    %p52 = scmp.eq.s32.totalorder %s26, 0
    %p53 = por %p51, %p52
    %s54 = ssub.s32 %s20, %s27
    %p55 = scmp.eq.s32.totalorder %s54, 0
    %s57 = sadd.s32 %s56, 1
    %s58 = scalar_select %p55, %s56, %s57
    %p61 = pneg %p55
    %p62 = scmp.eq.s32.totalorder %s20, 1
    %p63 = por %p61, %p62
    %p64 = scmp.ne.s32.totalorder %s56, %s59
    %p65 = scmp.eq.s32.totalorder %s20, 0
    %p66 = por %p64, %p65
    %p67 = scmp.ne.s32.totalorder %s56, %s59
    %p68 = scmp.eq.s32.totalorder %s25, 1
    %p69 = por %p67, %p68
    %p70 = scmp.ne.s32.totalorder %s59, %s60
    %p71 = scmp.eq.s32.totalorder %s25, 0
    %p72 = por %p70, %p71
    %p73 = scmp.ne.s32.totalorder %s59, %s60
    %p74 = scmp.eq.s32.totalorder %s26, 1
    %p75 = por %p73, %p74
    %p77 = scmp.ne.s32.totalorder %s60, %s76
    %p78 = scmp.eq.s32.totalorder %s26, 0
    %p79 = por %p77, %p78
    %s81 = sadd.s32 %s80, 1
    %p84 = scmp.eq.s32.totalorder %s20, 1
    %p85 = scmp.ne.s32.totalorder %s80, %s82
    %p86 = scmp.eq.s32.totalorder %s20, 0
    %p87 = por %p85, %p86
    %p88 = scmp.ne.s32.totalorder %s80, %s82
    %p89 = scmp.eq.s32.totalorder %s25, 1
    %p90 = por %p88, %p89
    %p91 = scmp.ne.s32.totalorder %s82, %s83
    %p92 = scmp.eq.s32.totalorder %s25, 0
    %p93 = por %p91, %p92
    %p94 = scmp.ne.s32.totalorder %s82, %s83
    %p95 = scmp.eq.s32.totalorder %s26, 1
    %p96 = por %p94, %p95
    %p98 = scmp.ne.s32.totalorder %s83, %s97
    %p99 = scmp.eq.s32.totalorder %s26, 0
    %p100 = por %p98, %p99
    %s102 = sadd.s32 %s101, 1
    %p105 = scmp.eq.s32.totalorder %s20, 1
    %p106 = scmp.ne.s32.totalorder %s101, %s103
    %p107 = scmp.eq.s32.totalorder %s20, 0
    %p108 = por %p106, %p107
    %p109 = scmp.ne.s32.totalorder %s101, %s103
    %p110 = scmp.eq.s32.totalorder %s25, 1
    %p111 = por %p109, %p110
    %p112 = scmp.ne.s32.totalorder %s103, %s104
    %p113 = scmp.eq.s32.totalorder %s25, 0
    %p114 = por %p112, %p113
    %p115 = scmp.ne.s32.totalorder %s103, %s104
    %p116 = scmp.eq.s32.totalorder %s26, 1
    %p117 = por %p115, %p116
    %p119 = scmp.ne.s32.totalorder %s104, %s118
    %p120 = scmp.eq.s32.totalorder %s26, 0
    %p121 = por %p119, %p120
    %s123 = sadd.s32 %s122, 1
    %p126 = scmp.eq.s32.totalorder %s20, 1
    %p127 = scmp.ne.s32.totalorder %s122, %s124
    %p128 = scmp.eq.s32.totalorder %s20, 0
    %p129 = por %p127, %p128
    %p130 = scmp.ne.s32.totalorder %s122, %s124
    %p131 = scmp.eq.s32.totalorder %s25, 1
    %p132 = por %p130, %p131
    %p133 = scmp.ne.s32.totalorder %s124, %s125
    %p134 = scmp.eq.s32.totalorder %s25, 0
    %p135 = por %p133, %p134
    %p136 = scmp.ne.s32.totalorder %s124, %s125
    %p137 = scmp.eq.s32.totalorder %s26, 1
    %p138 = por %p136, %p137
    %p140 = scmp.ne.s32.totalorder %s125, %s139
    %p141 = scmp.eq.s32.totalorder %s26, 0
    %p142 = por %p140, %p141
    %s144 = sadd.s32 %s143, 1
    %p147 = scmp.eq.s32.totalorder %s20, 1
    %p148 = scmp.ne.s32.totalorder %s143, %s145
    %p149 = scmp.eq.s32.totalorder %s20, 0
    %p150 = por %p148, %p149
    %p151 = scmp.ne.s32.totalorder %s143, %s145
    %p152 = scmp.eq.s32.totalorder %s25, 1
    %p153 = por %p151, %p152
    %p154 = scmp.ne.s32.totalorder %s145, %s146
    %p155 = scmp.eq.s32.totalorder %s25, 0
    %p156 = por %p154, %p155
    %p157 = scmp.ne.s32.totalorder %s145, %s146
    %p158 = scmp.eq.s32.totalorder %s26, 1
    %p159 = por %p157, %p158
    %p161 = scmp.ne.s32.totalorder %s146, %s160
    %p162 = scmp.eq.s32.totalorder %s26, 0
    %p163 = por %p161, %p162
    %s165 = sadd.s32 %s164, 1
    %p168 = scmp.eq.s32.totalorder %s20, 1
    %p169 = scmp.ne.s32.totalorder %s164, %s166
    %p170 = scmp.eq.s32.totalorder %s20, 0
    %p171 = por %p169, %p170
    %p172 = scmp.ne.s32.totalorder %s164, %s166
    %p173 = scmp.eq.s32.totalorder %s25, 1
    %p174 = por %p172, %p173
    %p175 = scmp.ne.s32.totalorder %s166, %s167
    %p176 = scmp.eq.s32.totalorder %s25, 0
    %p177 = por %p175, %p176
    %p178 = scmp.ne.s32.totalorder %s166, %s167
    %p179 = scmp.eq.s32.totalorder %s26, 1
    %p180 = por %p178, %p179
    %p182 = scmp.ne.s32.totalorder %s167, %s181
    %p183 = scmp.eq.s32.totalorder %s26, 0
    %p184 = por %p182, %p183
    %s186 = sadd.s32 %s185, 1
    %p189 = scmp.eq.s32.totalorder %s20, 1
    %p190 = scmp.ne.s32.totalorder %s185, %s187
    %p191 = scmp.eq.s32.totalorder %s20, 0
    %p192 = por %p190, %p191
    %p193 = scmp.ne.s32.totalorder %s185, %s187
    %p194 = scmp.eq.s32.totalorder %s25, 1
    %p195 = por %p193, %p194
    %p196 = scmp.ne.s32.totalorder %s187, %s188
    %p197 = scmp.eq.s32.totalorder %s25, 0
    %p198 = por %p196, %p197
    %p199 = scmp.ne.s32.totalorder %s187, %s188
    %p200 = scmp.eq.s32.totalorder %s26, 1
    %p201 = por %p199, %p200
    %p203 = scmp.ne.s32.totalorder %s188, %s202
    %p204 = scmp.eq.s32.totalorder %s26, 0
    %p205 = por %p203, %p204
    %s207 = sadd.s32 %s206, 1
    %p210 = scmp.eq.s32.totalorder %s20, 1
    %p211 = scmp.ne.s32.totalorder %s206, %s208
    %p212 = scmp.eq.s32.totalorder %s20, 0
    %p213 = por %p211, %p212
    %p214 = scmp.ne.s32.totalorder %s206, %s208
    %p215 = scmp.eq.s32.totalorder %s25, 1
    %p216 = por %p214, %p215
    %p217 = scmp.ne.s32.totalorder %s208, %s209
    %p218 = scmp.eq.s32.totalorder %s25, 0
    %p219 = por %p217, %p218
    %p220 = scmp.ne.s32.totalorder %s208, %s209
    %p221 = scmp.eq.s32.totalorder %s26, 1
    %p222 = por %p220, %p221
    %p224 = scmp.ne.s32.totalorder %s209, %s223
    %p225 = scmp.eq.s32.totalorder %s26, 0
    %p226 = por %p224, %p225
    %s228 = sadd.s32 %s227, 1
    %p231 = scmp.eq.s32.totalorder %s20, 1
    %p232 = scmp.ne.s32.totalorder %s227, %s229
    %p233 = scmp.eq.s32.totalorder %s20, 0
    %p234 = por %p232, %p233
    %p235 = scmp.ne.s32.totalorder %s227, %s229
    %p236 = scmp.eq.s32.totalorder %s25, 1
    %p237 = por %p235, %p236
    %p238 = scmp.ne.s32.totalorder %s229, %s230
    %p239 = scmp.eq.s32.totalorder %s25, 0
    %p240 = por %p238, %p239
    %p241 = scmp.ne.s32.totalorder %s229, %s230
    %p242 = scmp.eq.s32.totalorder %s26, 1
    %p243 = por %p241, %p242
    %p245 = scmp.ne.s32.totalorder %s230, %s244
    %p246 = scmp.eq.s32.totalorder %s26, 0
    %p247 = por %p245, %p246
    %s249 = sadd.s32 %s248, 1
    %p252 = scmp.eq.s32.totalorder %s20, 1
    %p253 = scmp.ne.s32.totalorder %s248, %s250
    %p254 = scmp.eq.s32.totalorder %s20, 0
    %p255 = por %p253, %p254
    %p256 = scmp.ne.s32.totalorder %s248, %s250
    %p257 = scmp.eq.s32.totalorder %s25, 1
    %p258 = por %p256, %p257
    %p259 = scmp.ne.s32.totalorder %s250, %s251
    %p260 = scmp.eq.s32.totalorder %s25, 0
    %p261 = por %p259, %p260
    %p262 = scmp.ne.s32.totalorder %s250, %s251
    %p263 = scmp.eq.s32.totalorder %s26, 1
    %p264 = por %p262, %p263
    %p266 = scmp.ne.s32.totalorder %s251, %s265
    %p267 = scmp.eq.s32.totalorder %s26, 0
    %p268 = por %p266, %p267
    %s270 = sadd.s32 %s269, 1
    %p273 = scmp.eq.s32.totalorder %s20, 1
    %p274 = scmp.ne.s32.totalorder %s269, %s271
    %p275 = scmp.eq.s32.totalorder %s20, 0
    %p276 = por %p274, %p275
    %p277 = scmp.ne.s32.totalorder %s269, %s271
    %p278 = scmp.eq.s32.totalorder %s25, 1
    %p279 = por %p277, %p278
    %p280 = scmp.ne.s32.totalorder %s271, %s272
    %p281 = scmp.eq.s32.totalorder %s25, 0
    %p282 = por %p280, %p281
    %p283 = scmp.ne.s32.totalorder %s271, %s272
    %p284 = scmp.eq.s32.totalorder %s26, 1
    %p285 = por %p283, %p284
    %p287 = scmp.ne.s32.totalorder %s272, %s286
    %p288 = scmp.eq.s32.totalorder %s26, 0
    %p289 = por %p287, %p288
    %s291 = sadd.s32 %s290, 1
    %p294 = scmp.eq.s32.totalorder %s20, 1
    %p295 = scmp.ne.s32.totalorder %s290, %s292
    %p296 = scmp.eq.s32.totalorder %s20, 0
    %p297 = por %p295, %p296
    %p298 = scmp.ne.s32.totalorder %s290, %s292
    %p299 = scmp.eq.s32.totalorder %s25, 1
    %p300 = por %p298, %p299
    %p301 = scmp.ne.s32.totalorder %s292, %s293
    %p302 = scmp.eq.s32.totalorder %s25, 0
    %p303 = por %p301, %p302
    %p304 = scmp.ne.s32.totalorder %s292, %s293
    %p305 = scmp.eq.s32.totalorder %s26, 1
    %p306 = por %p304, %p305
    %p308 = scmp.ne.s32.totalorder %s293, %s307
    %p309 = scmp.eq.s32.totalorder %s26, 0
    %p310 = por %p308, %p309
    %s312 = sadd.s32 %s311, 1
    %p315 = scmp.eq.s32.totalorder %s20, 1
    %p316 = scmp.ne.s32.totalorder %s311, %s313
    %p317 = scmp.eq.s32.totalorder %s20, 0
    %p318 = por %p316, %p317
    %p319 = scmp.ne.s32.totalorder %s311, %s313
    %p320 = scmp.eq.s32.totalorder %s25, 1
    %p321 = por %p319, %p320
    %p322 = scmp.ne.s32.totalorder %s313, %s314
    %p323 = scmp.eq.s32.totalorder %s25, 0
    %p324 = por %p322, %p323
    %p325 = scmp.ne.s32.totalorder %s313, %s314
    %p326 = scmp.eq.s32.totalorder %s26, 1
    %p327 = por %p325, %p326
    %p329 = scmp.ne.s32.totalorder %s314, %s328
    %p330 = scmp.eq.s32.totalorder %s26, 0
    %p331 = por %p329, %p330
    %s332 = ssub.s32 %s20, %s27
    %p333 = scmp.eq.s32.totalorder %s332, 0
    %s335 = sadd.s32 %s334, 1
    %s336 = scalar_select %p333, %s334, %s335
    %p339 = pneg %p333
    %p340 = scmp.eq.s32.totalorder %s20, 1
    %p341 = por %p339, %p340
    %p342 = scmp.ne.s32.totalorder %s334, %s337
    %p343 = scmp.eq.s32.totalorder %s20, 0
    %p344 = por %p342, %p343
    %p345 = scmp.ne.s32.totalorder %s334, %s337
    %p346 = scmp.eq.s32.totalorder %s25, 1
    %p347 = por %p345, %p346
    %p348 = scmp.ne.s32.totalorder %s337, %s338
    %p349 = scmp.eq.s32.totalorder %s25, 0
    %p350 = por %p348, %p349
    %p351 = scmp.ne.s32.totalorder %s337, %s338
    %p352 = scmp.eq.s32.totalorder %s26, 1
    %p353 = por %p351, %p352
    %p355 = scmp.ne.s32.totalorder %s338, %s354
    %p356 = scmp.eq.s32.totalorder %s26, 0
    %p357 = por %p355, %p356
    %p358 = scmp.le.s32.totalorder 1, %s20
    %p359 = scmp.lt.s32.totalorder %s20, 3
    %p360 = pnand %p358, %p359
    %p361 = pneg %p360
    // Predicated region
    $region9: #{roberta_for_sequence_classification.5} parent=5 // pred_check
      _
    $region10: #{roberta_for_sequence_classification.5} parent=5 // pred_check_branch
      %363 = sbr.rel (%p360) target = $region12
    $region11: #{roberta_for_sequence_classification.5} parent=5 // pred_region
      %s364 = ssub.s32 %s20, 1
      // Predicated region
      $region13: #{roberta_for_sequence_classification.5} parent=11 // pred_check
        %p365 = pneg %p93
      $region14: #{roberta_for_sequence_classification.5} parent=11 // pred_check_branch
        %367 = sbr.rel (%p365) target = $region16
      $region15: #{roberta_for_sequence_classification.5} parent=11 // pred_region
        _
      $region16: #{roberta_for_sequence_classification.5} parent=11 // pred_fallthru
        _
      // Predicated region
      $region17: #{roberta_for_sequence_classification.5} parent=11 // pred_check
        %p368 = pneg %p114
      $region18: #{roberta_for_sequence_classification.5} parent=11 // pred_check_branch
        %370 = sbr.rel (%p368) target = $region20
      $region19: #{roberta_for_sequence_classification.5} parent=11 // pred_region
        _
      $region20: #{roberta_for_sequence_classification.5} parent=11 // pred_fallthru
        _
      // Predicated region
      $region21: #{roberta_for_sequence_classification.5} parent=11 // pred_check
        %p371 = pneg %p135
      $region22: #{roberta_for_sequence_classification.5} parent=11 // pred_check_branch
        %373 = sbr.rel (%p371) target = $region24
      $region23: #{roberta_for_sequence_classification.5} parent=11 // pred_region
        _
      $region24: #{roberta_for_sequence_classification.5} parent=11 // pred_fallthru
        _
      // Predicated region
      $region25: #{roberta_for_sequence_classification.5} parent=11 // pred_check
        %p374 = pneg %p156
      $region26: #{roberta_for_sequence_classification.5} parent=11 // pred_check_branch
        %376 = sbr.rel (%p374) target = $region28
      $region27: #{roberta_for_sequence_classification.5} parent=11 // pred_region
        _
      $region28: #{roberta_for_sequence_classification.5} parent=11 // pred_fallthru
        _
      // Predicated region
      $region29: #{roberta_for_sequence_classification.5} parent=11 // pred_check
        %p377 = pneg %p177
      $region30: #{roberta_for_sequence_classification.5} parent=11 // pred_check_branch
        %379 = sbr.rel (%p377) target = $region32
      $region31: #{roberta_for_sequence_classification.5} parent=11 // pred_region
        _
      $region32: #{roberta_for_sequence_classification.5} parent=11 // pred_fallthru
        _
      // Predicated region
      $region33: #{roberta_for_sequence_classification.5} parent=11 // pred_check
        %p380 = pneg %p198
      $region34: #{roberta_for_sequence_classification.5} parent=11 // pred_check_branch
        %382 = sbr.rel (%p380) target = $region36
      $region35: #{roberta_for_sequence_classification.5} parent=11 // pred_region
        _
      $region36: #{roberta_for_sequence_classification.5} parent=11 // pred_fallthru
        _
      // Predicated region
      $region37: #{roberta_for_sequence_classification.5} parent=11 // pred_check
        %p383 = pneg %p219
      $region38: #{roberta_for_sequence_classification.5} parent=11 // pred_check_branch
        %385 = sbr.rel (%p383) target = $region40
      $region39: #{roberta_for_sequence_classification.5} parent=11 // pred_region
        _
      $region40: #{roberta_for_sequence_classification.5} parent=11 // pred_fallthru
        _
      // Predicated region
      $region41: #{roberta_for_sequence_classification.5} parent=11 // pred_check
        %p386 = pneg %p240
      $region42: #{roberta_for_sequence_classification.5} parent=11 // pred_check_branch
        %388 = sbr.rel (%p386) target = $region44
      $region43: #{roberta_for_sequence_classification.5} parent=11 // pred_region
        _
      $region44: #{roberta_for_sequence_classification.5} parent=11 // pred_fallthru
        _
      // Predicated region
      $region45: #{roberta_for_sequence_classification.5} parent=11 // pred_check
        %p389 = pneg %p261
      $region46: #{roberta_for_sequence_classification.5} parent=11 // pred_check_branch
        %391 = sbr.rel (%p389) target = $region48
      $region47: #{roberta_for_sequence_classification.5} parent=11 // pred_region
        _
      $region48: #{roberta_for_sequence_classification.5} parent=11 // pred_fallthru
        _
      // Predicated region
      $region49: #{roberta_for_sequence_classification.5} parent=11 // pred_check
        %p392 = pneg %p282
      $region50: #{roberta_for_sequence_classification.5} parent=11 // pred_check_branch
        %394 = sbr.rel (%p392) target = $region52
      $region51: #{roberta_for_sequence_classification.5} parent=11 // pred_region
        _
      $region52: #{roberta_for_sequence_classification.5} parent=11 // pred_fallthru
        _
      // Predicated region
      $region53: #{roberta_for_sequence_classification.5} parent=11 // pred_check
        %p395 = pneg %p303
      $region54: #{roberta_for_sequence_classification.5} parent=11 // pred_check_branch
        %397 = sbr.rel (%p395) target = $region56
      $region55: #{roberta_for_sequence_classification.5} parent=11 // pred_region
        _
      $region56: #{roberta_for_sequence_classification.5} parent=11 // pred_fallthru
        _
      // Predicated region
      $region57: #{roberta_for_sequence_classification.5} parent=11 // pred_check
        %p398 = pneg %p324
      $region58: #{roberta_for_sequence_classification.5} parent=11 // pred_check_branch
        %400 = sbr.rel (%p398) target = $region60
      $region59: #{roberta_for_sequence_classification.5} parent=11 // pred_region
        _
      $region60: #{roberta_for_sequence_classification.5} parent=11 // pred_fallthru
        _
    $region12: #{roberta_for_sequence_classification.5} parent=5 // pred_fallthru
      _
    %p401 = scmp.lt.s32.totalorder %s20, 2
    // Predicated region
    $region61: #{roberta_for_sequence_classification.5} parent=5 // pred_check
      %p402 = pneg %p401
    $region62: #{roberta_for_sequence_classification.5} parent=5 // pred_check_branch
      %404 = sbr.rel (%p402) target = $region64
    $region63: #{roberta_for_sequence_classification.5} parent=5 // pred_region
      // Predicated region
      $region65: #{roberta_for_sequence_classification.5} parent=63 // pred_check
        %p405 = pneg %p40
      $region66: #{roberta_for_sequence_classification.5} parent=63 // pred_check_branch
        %407 = sbr.rel (%p405) target = $region68
      $region67: #{roberta_for_sequence_classification.5} parent=63 // pred_region
        %p408 = scmp.lt.s32.totalorder %s20, 1
        %s409 = scalar_select %p408, %s20, 1
        %s410 = smul.addr %s409, 8
        %s411 = scalar_lea.vmem %s0, %s410
      $region68: #{roberta_for_sequence_classification.5} parent=63 // pred_fallthru
        _
      // Predicated region
      $region69: #{roberta_for_sequence_classification.5} parent=63 // pred_check
        %p412 = pneg %p66
      $region70: #{roberta_for_sequence_classification.5} parent=63 // pred_check_branch
        %414 = sbr.rel (%p412) target = $region72
      $region71: #{roberta_for_sequence_classification.5} parent=63 // pred_region
        %p415 = scmp.lt.s32.totalorder %s20, 1
        %s416 = scalar_select %p415, %s20, 1
        %s417 = smul.addr %s416, 8
        %s418 = scalar_lea.vmem %s1, %s417
      $region72: #{roberta_for_sequence_classification.5} parent=63 // pred_fallthru
        _
    $region64: #{roberta_for_sequence_classification.5} parent=5 // pred_fallthru
      _
    %p419 = scmp.le.s32.totalorder 1, %s20
    %p420 = scmp.lt.s32.totalorder %s20, 3
    %p421 = pnand %p419, %p420
    %p422 = pneg %p421
    // Predicated region
    $region73: #{roberta_for_sequence_classification.5} parent=5 // pred_check
      _
    $region74: #{roberta_for_sequence_classification.5} parent=5 // pred_check_branch
      %424 = sbr.rel (%p421) target = $region76
    $region75: #{roberta_for_sequence_classification.5} parent=5 // pred_region
      %s425 = ssub.s32 %s20, 1
      %p426 = scmp.lt.s32.totalorder %s25, 1
      %s427 = scalar_select %p426, %s25, 1
      %s428 = smul.addr %s427, 8
      %s429 = scalar_lea.vmem %s0, %s428
      %p430 = pneg %p46
      %p431 = pneg %p43
      %p432 = scmp.lt.s32.totalorder %s25, 1
      %s433 = scalar_select %p432, %s25, 1
      %s434 = smul.addr %s433, 8
      %s435 = scalar_lea.vmem %s1, %s434
      %p436 = pneg %p72
      %p437 = pneg %p69
      %p438 = pneg %p93
      %p439 = pneg %p90
      %p440 = pneg %p114
      %p441 = pneg %p111
      %p442 = pneg %p135
      %p443 = pneg %p132
      %p444 = pneg %p156
      %p445 = pneg %p153
      %p446 = pneg %p177
      %p447 = pneg %p174
      %p448 = pneg %p198
      %p449 = pneg %p195
      %p450 = pneg %p219
      %p451 = pneg %p216
      %p452 = pneg %p240
      %p453 = pneg %p237
      %p454 = pneg %p261
      %p455 = pneg %p258
      %p456 = pneg %p282
      %p457 = pneg %p279
      %p458 = pneg %p303
      %p459 = pneg %p300
      %p460 = pneg %p324
      %p461 = pneg %p321
      %p462 = pneg %p350
      %p463 = pneg %p347
      %p464 = scmp.lt.s32.totalorder %s25, 1
      %s465 = scalar_select %p464, %s25, 1
      %s466 = smul.addr %s465, 8
      %s467 = scalar_lea.vmem %s14, %s466
      %p468 = scmp.lt.s32.totalorder %s25, 1
      %s469 = scalar_select %p468, %s25, 1
      %s470 = smul.addr %s469, 8
      %s471 = scalar_lea.vmem %s0, %s470
      %p472 = scmp.lt.s32.totalorder %s25, 1
      %s473 = scalar_select %p472, %s25, 1
      %s474 = smul.addr %s473, 8
      %s475 = scalar_lea.vmem %s1, %s474
      %p476 = scmp.lt.s32.totalorder %s25, 1
      %s477 = scalar_select %p476, %s25, 1
      %s478 = smul.addr %s477, 8
      %s479 = scalar_lea.vmem %s14, %s478
      %v481 = vld [vmem:[%s471] sm:$0xff]
      %v482 = vpack.c.bf16 %v481, %v481
      %v483 = vld [vmem:[%s475] sm:$0xff]
      %v484 = vld [vmem:[%s2] sm:$0xff]
      %v485 = vld [vmem:[%s2 + $0x8] sm:$0xff]
      %v486 = vld [vmem:[%s2 + $0x10] sm:$0xff]
      %v487 = vld [vmem:[%s2 + $0x18] sm:$0xff]
      %v488 = vld [vmem:[%s2 + $0x20] sm:$0xff]
      %v489 = vld [vmem:[%s2 + $0x28] sm:$0xff]
      %v490 = vld [vmem:[%s2 + $0x30] sm:$0xff]
      %v491 = vld [vmem:[%s2 + $0x38] sm:$0xff]
      %v492 = vld [vmem:[%s3] sm:$0x3]
      %v494 = vperm.slane %v492, 0
      %v495 = vperm.slane %v492, 1
      %v506 = vunpack.c.l.b16 %v484
      %v507 = vunpack.c.h.b16 %v484
      %v508 = vunpack.c.l.b16 %v485
      %v509 = vunpack.c.h.b16 %v485
      %v510 = vunpack.c.l.b16 %v486
      %v511 = vunpack.c.h.b16 %v486
      %v512 = vunpack.c.l.b16 %v487
      %v513 = vunpack.c.h.b16 %v487
      %v514 = vunpack.c.l.b16 %v488
      %v515 = vunpack.c.h.b16 %v488
      %v516 = vunpack.c.l.b16 %v489
      %v517 = vunpack.c.h.b16 %v489
      %v518 = vunpack.c.l.b16 %v490
      %v519 = vunpack.c.h.b16 %v490
      %v520 = vunpack.c.l.b16 %v491
      %v521 = vunpack.c.h.b16 %v491
      %v522 = vpack.c.b16 %v508, %v506
      %v523 = vpack.c.b16 %v509, %v507
      %v524 = vpack.c.b16 %v512, %v510
      %v525 = vpack.c.b16 %v513, %v511
      %v526 = vpack.c.b16 %v516, %v514
      %v527 = vpack.c.b16 %v517, %v515
      %v528 = vpack.c.b16 %v520, %v518
      %v529 = vpack.c.b16 %v521, %v519
      %vm538 = vcmask 523264
      %v540 = vsel %vm538, %v482, 0
      %542 = vmatpush.bf16.msra.mxu0 0
      %543 = vmatpush.bf16.msra.mxu0 0
      %544 = vmatpush.bf16.msra.mxu0 0
      %545 = vmatpush.bf16.msra.mxu0 0
      %546 = vmatpush.bf16.msra.mxu0 %v528
      %547 = vmatpush.bf16.msra.mxu0 %v526
      %548 = vmatpush.bf16.msra.mxu0 %v524
      %549 = vmatpush.bf16.msra.mxu0 %v522
      %550 = vmatmul.bf16.gmra.mxu0 %v540
      %v551 = vpop.f32.mrf.mxu0
      %v552 = vadd.f32 %v494, %v551
      %v553 = vpop.f32.mrf.mxu0
      %554 = vdwg.mxu0
      %555 = vmatpush.bf16.msra.mxu0 0
      %556 = vmatpush.bf16.msra.mxu0 0
      %557 = vmatpush.bf16.msra.mxu0 0
      %558 = vmatpush.bf16.msra.mxu0 0
      %559 = vmatpush.bf16.msra.mxu0 %v529
      %560 = vmatpush.bf16.msra.mxu0 %v527
      %561 = vmatpush.bf16.msra.mxu0 %v525
      %562 = vmatpush.bf16.msra.mxu0 %v523
      %563 = vmatmul.bf16.gmra.mxu0 %v540
      %v564 = vpop.f32.mrf.mxu0
      %v565 = vadd.f32 %v495, %v564
      %v566 = vpop.f32.mrf.mxu0
      %567 = vdwg.mxu0
      %v568 = vpack.c.bf16 %v552, %v552
      %v569 = vpack.c.bf16 %v565, %v565
      %571 = vrot.lane.b32.xlu0 %v568, 64
      %v572 = vpop.permute.xlu0 %571
      %vm573 = vcmask 130048
      %v575 = vsel %vm573, %v568, 0
      %v578 = vsel %vm573, %v572, 0
      %580 = vmatpush.bf16.xpose.msra.mxu0 0
      %581 = vmatpush.bf16.xpose.msra.mxu0 0
      %582 = vmatpush.bf16.xpose.msra.mxu0 0
      %583 = vmatpush.bf16.xpose.msra.mxu0 0
      %584 = vmatpush.bf16.xpose.msra.mxu0 0
      %585 = vmatpush.bf16.xpose.msra.mxu0 0
      %586 = vmatpush.bf16.xpose.msra.mxu0 0
      %587 = vmatpush.bf16.xpose.msra.mxu0 %v578
      %588 = vmatmul.bf16.gmra.mxu0 %v575
      %v589 = vpop.f32.mrf.mxu0
      %v590 = vadd.f32 0.0, %v589
      %v591 = vpop.f32.mrf.mxu0
      %592 = vdwg.mxu0
      %v593 = vmul.f32 %v590, 0.25
      %v594 = vadd.f32 %v593, %v483
      %vm595 = vcmask 64512
      %v596 = vsel %vm595, %v594, -inf
      %597 = vmax.xlane.f32.xlu0 %v596
      %v598 = vpop.xlane.xlu0 %597
      %v599 = vsub.f32 %v594, %v598
      %v600 = vmul.f32 %v599, 1.442695
      %v601 = vpow.pop %v600
      %v602 = vsel %vm595, %v601, 0.0
      %603 = vadd.xlane.f32.xlu0 %v602
      %v604 = vpop.xlane.xlu0 %603
      %v605 = vrcp.pop %v604
      %v606 = vmul.f32 %v601, %v605
      %v607 = vpack.c.bf16 %v606, %v606
      %v609 = vsel %vm595, %v607, 0
      %vm611 = vcmask 1043456
      %v613 = vsel %vm611, %v569, 0
      %615 = vmatpush.bf16.msra.mxu0 0
      %616 = vmatpush.bf16.msra.mxu0 0
      %617 = vmatpush.bf16.msra.mxu0 0
      %618 = vmatpush.bf16.msra.mxu0 0
      %619 = vmatpush.bf16.msra.mxu0 0
      %620 = vmatpush.bf16.msra.mxu0 0
      %621 = vmatpush.bf16.msra.mxu0 0
      %622 = vmatpush.bf16.msra.mxu0 %v613
      %623 = vmatmul.bf16.gmra.mxu0 %v609
      %v624 = vpop.f32.mrf.mxu0
      %v625 = vadd.f32 0.0, %v624
      %v626 = vpop.f32.mrf.mxu0
      %627 = vdwg.mxu0
      %628 = vst.msk [vmem:[#allocation2] sm:$0xff] %vm573, %v625
      %629 = vrot.lane.b32.xlu0 %v568, 112
      %v630 = vpop.permute.xlu0 %629
      %631 = vrot.lane.b32.xlu0 %v568, 48
      %v632 = vpop.permute.xlu0 %631
      %v634 = vsel %vm573, %v630, 0
      %v637 = vsel %vm573, %v632, 0
      %639 = vmatpush.bf16.xpose.msra.mxu0 0
      %640 = vmatpush.bf16.xpose.msra.mxu0 0
      %641 = vmatpush.bf16.xpose.msra.mxu0 0
      %642 = vmatpush.bf16.xpose.msra.mxu0 0
      %643 = vmatpush.bf16.xpose.msra.mxu0 0
      %644 = vmatpush.bf16.xpose.msra.mxu0 0
      %645 = vmatpush.bf16.xpose.msra.mxu0 0
      %646 = vmatpush.bf16.xpose.msra.mxu0 %v637
      %647 = vmatmul.bf16.gmra.mxu0 %v634
      %v648 = vpop.f32.mrf.mxu0
      %v649 = vadd.f32 0.0, %v648
      %v650 = vpop.f32.mrf.mxu0
      %651 = vdwg.mxu0
      %v652 = vmul.f32 %v649, 0.25
      %v653 = vadd.f32 %v652, %v483
      %v654 = vsel %vm595, %v653, -inf
      %655 = vmax.xlane.f32.xlu0 %v654
      %v656 = vpop.xlane.xlu0 %655
      %v657 = vsub.f32 %v653, %v656
      %v658 = vmul.f32 %v657, 1.442695
      %v659 = vpow.pop %v658
      %v660 = vsel %vm595, %v659, 0.0
      %661 = vadd.xlane.f32.xlu0 %v660
      %v662 = vpop.xlane.xlu0 %661
      %v663 = vrcp.pop %v662
      %v664 = vmul.f32 %v659, %v663
      %v665 = vpack.c.bf16 %v664, %v664
      %667 = vrot.lane.b32.xlu0 %v569, 112
      %v668 = vpop.permute.xlu0 %667
      %v670 = vsel %vm595, %v665, 0
      %v673 = vsel %vm611, %v668, 0
      %675 = vmatpush.bf16.msra.mxu0 0
      %676 = vmatpush.bf16.msra.mxu0 0
      %677 = vmatpush.bf16.msra.mxu0 0
      %678 = vmatpush.bf16.msra.mxu0 0
      %679 = vmatpush.bf16.msra.mxu0 0
      %680 = vmatpush.bf16.msra.mxu0 0
      %681 = vmatpush.bf16.msra.mxu0 0
      %682 = vmatpush.bf16.msra.mxu0 %v673
      %683 = vmatmul.bf16.gmra.mxu0 %v670
      %v684 = vpop.f32.mrf.mxu0
      %v685 = vadd.f32 0.0, %v684
      %v686 = vpop.f32.mrf.mxu0
      %687 = vdwg.mxu0
      %689 = vrot.lane.b32.xlu0 %v685, 16
      %v690 = vpop.permute.xlu0 %689
      %vm692 = vcmask 261248
      %693 = vst.msk [vmem:[#allocation2] sm:$0xff] %vm692, %v690
      %694 = vrot.lane.b32.xlu0 %v568, 96
      %v695 = vpop.permute.xlu0 %694
      %696 = vrot.lane.b32.xlu0 %v568, 32
      %v697 = vpop.permute.xlu0 %696
      %v699 = vsel %vm573, %v695, 0
      %v702 = vsel %vm573, %v697, 0
      %704 = vmatpush.bf16.xpose.msra.mxu0 0
      %705 = vmatpush.bf16.xpose.msra.mxu0 0
      %706 = vmatpush.bf16.xpose.msra.mxu0 0
      %707 = vmatpush.bf16.xpose.msra.mxu0 0
      %708 = vmatpush.bf16.xpose.msra.mxu0 0
      %709 = vmatpush.bf16.xpose.msra.mxu0 0
      %710 = vmatpush.bf16.xpose.msra.mxu0 0
      %711 = vmatpush.bf16.xpose.msra.mxu0 %v702
      %712 = vmatmul.bf16.gmra.mxu0 %v699
      %v713 = vpop.f32.mrf.mxu0
      %v714 = vadd.f32 0.0, %v713
      %v715 = vpop.f32.mrf.mxu0
      %716 = vdwg.mxu0
      %v717 = vmul.f32 %v714, 0.25
      %v718 = vadd.f32 %v717, %v483
      %v719 = vsel %vm595, %v718, -inf
      %720 = vmax.xlane.f32.xlu0 %v719
      %v721 = vpop.xlane.xlu0 %720
      %v722 = vsub.f32 %v718, %v721
      %v723 = vmul.f32 %v722, 1.442695
      %v724 = vpow.pop %v723
      %v725 = vsel %vm595, %v724, 0.0
      %726 = vadd.xlane.f32.xlu0 %v725
      %v727 = vpop.xlane.xlu0 %726
      %v728 = vrcp.pop %v727
      %v729 = vmul.f32 %v724, %v728
      %v730 = vpack.c.bf16 %v729, %v729
      %731 = vrot.lane.b32.xlu0 %v569, 96
      %v732 = vpop.permute.xlu0 %731
      %v734 = vsel %vm595, %v730, 0
      %v737 = vsel %vm611, %v732, 0
      %739 = vmatpush.bf16.msra.mxu0 0
      %740 = vmatpush.bf16.msra.mxu0 0
      %741 = vmatpush.bf16.msra.mxu0 0
      %742 = vmatpush.bf16.msra.mxu0 0
      %743 = vmatpush.bf16.msra.mxu0 0
      %744 = vmatpush.bf16.msra.mxu0 0
      %745 = vmatpush.bf16.msra.mxu0 0
      %746 = vmatpush.bf16.msra.mxu0 %v737
      %747 = vmatmul.bf16.gmra.mxu0 %v734
      %v748 = vpop.f32.mrf.mxu0
      %v749 = vadd.f32 0.0, %v748
      %v750 = vpop.f32.mrf.mxu0
      %751 = vdwg.mxu0
      %753 = vrot.lane.b32.xlu0 %v749, 32
      %v754 = vpop.permute.xlu0 %753
      %vm756 = vcmask 392448
      %757 = vst.msk [vmem:[#allocation2] sm:$0xff] %vm756, %v754
      %758 = vrot.lane.b32.xlu0 %v568, 80
      %v759 = vpop.permute.xlu0 %758
      %760 = vrot.lane.b32.xlu0 %v568, 16
      %v761 = vpop.permute.xlu0 %760
      %v763 = vsel %vm573, %v759, 0
      %v766 = vsel %vm573, %v761, 0
      %768 = vmatpush.bf16.xpose.msra.mxu0 0
      %769 = vmatpush.bf16.xpose.msra.mxu0 0
      %770 = vmatpush.bf16.xpose.msra.mxu0 0
      %771 = vmatpush.bf16.xpose.msra.mxu0 0
      %772 = vmatpush.bf16.xpose.msra.mxu0 0
      %773 = vmatpush.bf16.xpose.msra.mxu0 0
      %774 = vmatpush.bf16.xpose.msra.mxu0 0
      %775 = vmatpush.bf16.xpose.msra.mxu0 %v766
      %776 = vmatmul.bf16.gmra.mxu0 %v763
      %v777 = vpop.f32.mrf.mxu0
      %v778 = vadd.f32 0.0, %v777
      %v779 = vpop.f32.mrf.mxu0
      %780 = vdwg.mxu0
      %v781 = vmul.f32 %v778, 0.25
      %v782 = vadd.f32 %v781, %v483
      %v783 = vsel %vm595, %v782, -inf
      %784 = vmax.xlane.f32.xlu0 %v783
      %v785 = vpop.xlane.xlu0 %784
      %v786 = vsub.f32 %v782, %v785
      %v787 = vmul.f32 %v786, 1.442695
      %v788 = vpow.pop %v787
      %v789 = vsel %vm595, %v788, 0.0
      %790 = vadd.xlane.f32.xlu0 %v789
      %v791 = vpop.xlane.xlu0 %790
      %v792 = vrcp.pop %v791
      %v793 = vmul.f32 %v788, %v792
      %v794 = vpack.c.bf16 %v793, %v793
      %795 = vrot.lane.b32.xlu0 %v569, 80
      %v796 = vpop.permute.xlu0 %795
      %v798 = vsel %vm595, %v794, 0
      %v801 = vsel %vm611, %v796, 0
      %803 = vmatpush.bf16.msra.mxu0 0
      %804 = vmatpush.bf16.msra.mxu0 0
      %805 = vmatpush.bf16.msra.mxu0 0
      %806 = vmatpush.bf16.msra.mxu0 0
      %807 = vmatpush.bf16.msra.mxu0 0
      %808 = vmatpush.bf16.msra.mxu0 0
      %809 = vmatpush.bf16.msra.mxu0 0
      %810 = vmatpush.bf16.msra.mxu0 %v801
      %811 = vmatmul.bf16.gmra.mxu0 %v798
      %v812 = vpop.f32.mrf.mxu0
      %v813 = vadd.f32 0.0, %v812
      %v814 = vpop.f32.mrf.mxu0
      %815 = vdwg.mxu0
      %817 = vrot.lane.b32.xlu0 %v813, 48
      %v818 = vpop.permute.xlu0 %817
      %vm820 = vcmask 523648
      %821 = vst.msk [vmem:[#allocation2] sm:$0xff] %vm820, %v818
      %v822 = vld [vmem:[#allocation2] sm:$0xff]
      %v823 = vpack.c.bf16 %v822, %v822
      %v824 = vld [vmem:[%s4] sm:$0xf]
      %v825 = vld [vmem:[%s4 + $0x4] sm:$0xf]
      %v826 = vld [vmem:[%s4 + $0x8] sm:$0xf]
      %v827 = vld [vmem:[%s4 + $0xc] sm:$0xf]
      %v828 = vld [vmem:[%s4 + $0x10] sm:$0xf]
      %v829 = vld [vmem:[%s4 + $0x14] sm:$0xf]
      %v830 = vld [vmem:[%s4 + $0x18] sm:$0xf]
      %v831 = vld [vmem:[%s4 + $0x1c] sm:$0xf]
      %v832 = vld [vmem:[%s5] sm:$0x1]
      %v834 = vperm.slane %v832, 0
      %v844 = vunpack.c.l.b16 %v824
      %v845 = vunpack.c.l.b16 %v825
      %v846 = vunpack.c.l.b16 %v826
      %v847 = vunpack.c.l.b16 %v827
      %v848 = vunpack.c.l.b16 %v828
      %v849 = vunpack.c.l.b16 %v829
      %v850 = vunpack.c.l.b16 %v830
      %v851 = vunpack.c.l.b16 %v831
      %v852 = vpack.c.b16 %v845, %v844
      %v853 = vpack.c.b16 %v847, %v846
      %v854 = vpack.c.b16 %v849, %v848
      %v855 = vpack.c.b16 %v851, %v850
      %v861 = vsel %vm538, %v823, 0
      %863 = vmatpush.bf16.msra.mxu0 0
      %864 = vmatpush.bf16.msra.mxu0 0
      %865 = vmatpush.bf16.msra.mxu0 0
      %866 = vmatpush.bf16.msra.mxu0 0
      %867 = vmatpush.bf16.msra.mxu0 %v855
      %868 = vmatpush.bf16.msra.mxu0 %v854
      %869 = vmatpush.bf16.msra.mxu0 %v853
      %870 = vmatpush.bf16.msra.mxu0 %v852
      %871 = vmatmul.bf16.gmra.mxu0 %v861
      %v872 = vpop.f32.mrf.mxu0
      %v873 = vadd.f32 %v834, %v872
      %v874 = vpop.f32.mrf.mxu0
      %875 = vdwg.mxu0
      %v876 = vadd.f32 %v873, %v481
      %v877 = vld [vmem:[%s6] sm:$0x1]
      %v878 = vld [vmem:[%s7] sm:$0x1]
      %v879 = vsel %vm538, %v876, 0.0
      %880 = vadd.xlane.f32.xlu0 %v879
      %v881 = vpop.xlane.xlu0 %880
      %v882 = vrcp.pop 64.0
      %v883 = vmul.f32 64.0, %v882
      %v884 = vsub.f32 1.0, %v883
      %v885 = vmul.f32 %v882, %v884
      %v886 = vadd.f32 %v882, %v885
      %vm887 = vweird.f32 %v882
      %v888 = vsel %vm887, %v882, %v886
      %v889 = vmul.f32 %v881, %v888
      %v890 = vsub.f32 %v876, %v889
      %v891 = vmul.f32 %v890, %v890
      %v892 = vsel %vm538, %v891, 0.0
      %893 = vadd.xlane.f32.xlu0 %v892
      %v894 = vpop.xlane.xlu0 %893
      %v895 = vmul.f32 %v894, %v888
      %v896 = vadd.f32 %v895, 1e-05
      %v897 = vrsqrt.pop %v896
      %v898 = vmul.f32 %v897, %v896
      %v899 = vmul.f32 %v898, %v897
      %v900 = vmul.f32 0.5, %v899
      %v901 = vsub.f32 1.5, %v900
      %v902 = vmul.f32 %v897, %v901
      %vm903 = vweird.f32 %v896
      %vm904 = vweird.f32 %v897
      %vm905 = vmor %vm903, %vm904
      %v906 = vsel %vm905, %v897, %v902
      %v907 = vmul.f32 %v890, %v906
      %v909 = vperm.slane %v877, 0
      %v911 = vmul.f32 %v907, %v909
      %v913 = vperm.slane %v878, 0
      %v915 = vadd.f32 %v911, %v913
      %v916 = vpack.c.bf16 %v915, %v915
      %v917 = vld [vmem:[%s8] sm:$0xf]
      %v918 = vld [vmem:[%s8 + $0x4] sm:$0xf]
      %v919 = vld [vmem:[%s8 + $0x8] sm:$0xf]
      %v920 = vld [vmem:[%s8 + $0xc] sm:$0xf]
      %v921 = vld [vmem:[%s8 + $0x10] sm:$0xf]
      %v922 = vld [vmem:[%s8 + $0x14] sm:$0xf]
      %v923 = vld [vmem:[%s8 + $0x18] sm:$0xf]
      %v924 = vld [vmem:[%s8 + $0x1c] sm:$0xf]
      %v925 = vld [vmem:[%s9] sm:$0x1]
      %v927 = vperm.slane %v925, 0
      %v937 = vunpack.c.l.b16 %v917
      %v938 = vunpack.c.l.b16 %v918
      %v939 = vunpack.c.l.b16 %v919
      %v940 = vunpack.c.l.b16 %v920
      %v941 = vunpack.c.l.b16 %v921
      %v942 = vunpack.c.l.b16 %v922
      %v943 = vunpack.c.l.b16 %v923
      %v944 = vunpack.c.l.b16 %v924
      %v945 = vpack.c.b16 %v938, %v937
      %v946 = vpack.c.b16 %v940, %v939
      %v947 = vpack.c.b16 %v942, %v941
      %v948 = vpack.c.b16 %v944, %v943
      %v954 = vsel %vm538, %v916, 0
      %956 = vmatpush.bf16.msra.mxu0 0
      %957 = vmatpush.bf16.msra.mxu0 0
      %958 = vmatpush.bf16.msra.mxu0 0
      %959 = vmatpush.bf16.msra.mxu0 0
      %960 = vmatpush.bf16.msra.mxu0 %v948
      %961 = vmatpush.bf16.msra.mxu0 %v947
      %962 = vmatpush.bf16.msra.mxu0 %v946
      %963 = vmatpush.bf16.msra.mxu0 %v945
      %964 = vmatmul.bf16.gmra.mxu0 %v954
      %v965 = vpop.f32.mrf.mxu0
      %v966 = vadd.f32 %v927, %v965
      %v967 = vpop.f32.mrf.mxu0
      %968 = vdwg.mxu0
      %v969 = vmul.f32 %v966, 0.5
      %v970 = vmul.f32 %v966, 0.70710677
      %v971 = vmul.f32 %v970, %v970
      %v972 = vmin.f32 16.0, %v971
      %v973 = vmul.f32 %v972, 2.1237322e-06
      %v974 = vadd.f32 %v973, 0.00028619796
      %v975 = vmul.f32 %v972, %v974
      %v976 = vadd.f32 %v975, 0.0036580483
      %v977 = vmul.f32 %v972, %v976
      %v978 = vadd.f32 %v977, 0.05243302
      %v979 = vmul.f32 %v972, %v978
      %v980 = vadd.f32 %v979, 0.18741608
      %v981 = vmul.f32 %v972, %v980
      %v982 = vadd.f32 %v981, 1.1283791
      %v983 = vmul.f32 %v970, %v982
      %v984 = vmul.f32 %v972, 3.8918573e-05
      %v985 = vadd.f32 %v984, 0.001143296
      %v986 = vmul.f32 %v972, %v985
      %v987 = vadd.f32 %v986, 0.014752088
      %v988 = vmul.f32 %v972, %v987
      %v989 = vadd.f32 %v988, 0.112945676
      %v990 = vmul.f32 %v972, %v989
      %v991 = vadd.f32 %v990, 0.4994258
      %v992 = vmul.f32 %v972, %v991
      %v993 = vadd.f32 %v992, 1.0
      %v994 = vrcp.pop %v993
      %v995 = vmul.f32 %v993, %v994
      %v996 = vsub.f32 1.0, %v995
      %v997 = vmul.f32 %v994, %v996
      %v998 = vadd.f32 %v994, %v997
      %vm999 = vweird.f32 %v993
      %vm1000 = vweird.f32 %v994
      %vm1001 = vmor %vm999, %vm1000
      %v1002 = vsel %vm1001, %v994, %v998
      %v1003 = vand.u32 2147483647, %v993
      %vm1004 = vcmp.eq.f32.partialorder %v1003, 8.507059e+37
      %v1005 = vand.u32 %v993, 2147483648
      %v1006 = vor.u32 1.1754944e-38, %v1005
      %v1007 = vsel %vm1004, %v1006, %v1002
      %v1008 = vmul.f32 %v983, %v1007
      %v1009 = vmin.f32 %v1008, 1.0
      %v1010 = vmax.f32 %v1009, -1.0
      %v1011 = vadd.f32 %v1010, 1.0
      %v1012 = vmul.f32 %v969, %v1011
      %v1013 = vpack.c.bf16 %v1012, %v1012
      %v1014 = vld [vmem:[%s10] sm:$0xf]
      %v1015 = vld [vmem:[%s10 + $0x4] sm:$0xf]
      %v1016 = vld [vmem:[%s10 + $0x8] sm:$0xf]
      %v1017 = vld [vmem:[%s10 + $0xc] sm:$0xf]
      %v1018 = vld [vmem:[%s10 + $0x10] sm:$0xf]
      %v1019 = vld [vmem:[%s10 + $0x14] sm:$0xf]
      %v1020 = vld [vmem:[%s10 + $0x18] sm:$0xf]
      %v1021 = vld [vmem:[%s10 + $0x1c] sm:$0xf]
      %v1022 = vld [vmem:[%s10 + $0x20] sm:$0xf]
      %v1023 = vld [vmem:[%s10 + $0x24] sm:$0xf]
      %v1024 = vld [vmem:[%s10 + $0x28] sm:$0xf]
      %v1025 = vld [vmem:[%s10 + $0x2c] sm:$0xf]
      %v1026 = vld [vmem:[%s10 + $0x30] sm:$0xf]
      %v1027 = vld [vmem:[%s10 + $0x34] sm:$0xf]
      %v1028 = vld [vmem:[%s10 + $0x38] sm:$0xf]
      %v1029 = vld [vmem:[%s10 + $0x3c] sm:$0xf]
      %v1030 = vld [vmem:[%s11] sm:$0x1]
      %v1032 = vperm.slane %v1030, 0
      %v1050 = vunpack.c.l.b16 %v1014
      %v1051 = vunpack.c.l.b16 %v1015
      %v1052 = vunpack.c.l.b16 %v1016
      %v1053 = vunpack.c.l.b16 %v1017
      %v1054 = vunpack.c.l.b16 %v1018
      %v1055 = vunpack.c.l.b16 %v1019
      %v1056 = vunpack.c.l.b16 %v1020
      %v1057 = vunpack.c.l.b16 %v1021
      %v1058 = vunpack.c.l.b16 %v1022
      %v1059 = vunpack.c.l.b16 %v1023
      %v1060 = vunpack.c.l.b16 %v1024
      %v1061 = vunpack.c.l.b16 %v1025
      %v1062 = vunpack.c.l.b16 %v1026
      %v1063 = vunpack.c.l.b16 %v1027
      %v1064 = vunpack.c.l.b16 %v1028
      %v1065 = vunpack.c.l.b16 %v1029
      %v1066 = vpack.c.b16 %v1051, %v1050
      %v1067 = vpack.c.b16 %v1053, %v1052
      %v1068 = vpack.c.b16 %v1055, %v1054
      %v1069 = vpack.c.b16 %v1057, %v1056
      %v1070 = vpack.c.b16 %v1059, %v1058
      %v1071 = vpack.c.b16 %v1061, %v1060
      %v1072 = vpack.c.b16 %v1063, %v1062
      %v1073 = vpack.c.b16 %v1065, %v1064
      %1082 = vmatpush.bf16.msra.mxu0 %v1073
      %1083 = vmatpush.bf16.msra.mxu0 %v1072
      %1084 = vmatpush.bf16.msra.mxu0 %v1071
      %1085 = vmatpush.bf16.msra.mxu0 %v1070
      %1086 = vmatpush.bf16.msra.mxu0 %v1069
      %1087 = vmatpush.bf16.msra.mxu0 %v1068
      %1088 = vmatpush.bf16.msra.mxu0 %v1067
      %1089 = vmatpush.bf16.msra.mxu0 %v1066
      %1090 = vmatmul.bf16.gmra.mxu0 %v1013
      %v1091 = vpop.f32.mrf.mxu0
      %v1092 = vadd.f32 %v1032, %v1091
      %v1093 = vpop.f32.mrf.mxu0
      %1094 = vdwg.mxu0
      %v1095 = vadd.f32 %v1092, %v915
      %v1096 = vld [vmem:[%s12] sm:$0x1]
      %v1097 = vld [vmem:[%s13] sm:$0x1]
      %v1098 = vsel %vm538, %v1095, 0.0
      %1099 = vadd.xlane.f32.xlu0 %v1098
      %v1100 = vpop.xlane.xlu0 %1099
      %v1101 = vmul.f32 %v1100, %v888
      %v1102 = vsub.f32 %v1095, %v1101
      %v1103 = vmul.f32 %v1102, %v1102
      %v1104 = vsel %vm538, %v1103, 0.0
      %1105 = vadd.xlane.f32.xlu0 %v1104
      %v1106 = vpop.xlane.xlu0 %1105
      %v1107 = vmul.f32 %v1106, %v888
      %v1108 = vadd.f32 %v1107, 1e-05
      %v1109 = vrsqrt.pop %v1108
      %v1110 = vmul.f32 %v1109, %v1108
      %v1111 = vmul.f32 %v1110, %v1109
      %v1112 = vmul.f32 0.5, %v1111
      %v1113 = vsub.f32 1.5, %v1112
      %v1114 = vmul.f32 %v1109, %v1113
      %vm1115 = vweird.f32 %v1108
      %vm1116 = vweird.f32 %v1109
      %vm1117 = vmor %vm1115, %vm1116
      %v1118 = vsel %vm1117, %v1109, %v1114
      %v1119 = vmul.f32 %v1102, %v1118
      %v1121 = vperm.slane %v1096, 0
      %v1123 = vmul.f32 %v1119, %v1121
      %v1125 = vperm.slane %v1097, 0
      %v1127 = vadd.f32 %v1123, %v1125
      %1128 = vst.msk [vmem:[%s479] sm:$0xff] %vm538, %v1127
      %p1129 = scmp.lt.s32.totalorder %s25, 1
      %s1130 = scalar_select %p1129, %s25, 1
      %s1131 = smul.addr %s1130, 8
      %s1132 = scalar_lea.vmem %s14, %s1131
      // Predicated region
      $region77: #{roberta_for_sequence_classification.5} parent=75 // pred_check
        %p1133 = pneg %p347
      $region78: #{roberta_for_sequence_classification.5} parent=75 // pred_check_branch
        %1135 = sbr.rel (%p1133) target = $region80
      $region79: #{roberta_for_sequence_classification.5} parent=75 // pred_region
        _
      $region80: #{roberta_for_sequence_classification.5} parent=75 // pred_fallthru
        _
    $region76: #{roberta_for_sequence_classification.5} parent=5 // pred_fallthru
      _
    %p1136 = scmp.le.s32.totalorder 2, %s20
    // Predicated region
    $region81: #{roberta_for_sequence_classification.5} parent=5 // pred_check
      %p1137 = pneg %p1136
    $region82: #{roberta_for_sequence_classification.5} parent=5 // pred_check_branch
      %1139 = sbr.rel (%p1137) target = $region84
    $region83: #{roberta_for_sequence_classification.5} parent=5 // pred_region
      %s1140 = ssub.s32 %s20, 2
      // Predicated region
      $region85: #{roberta_for_sequence_classification.5} parent=83 // pred_check
        %p1141 = pneg %p353
      $region86: #{roberta_for_sequence_classification.5} parent=83 // pred_check_branch
        %1143 = sbr.rel (%p1141) target = $region88
      $region87: #{roberta_for_sequence_classification.5} parent=83 // pred_region
        %p1144 = scmp.lt.s32.totalorder %s26, 1
        %s1145 = scalar_select %p1144, %s26, 1
        %s1146 = smul.addr %s1145, 8
        %s1147 = scalar_lea.vmem %s14, %s1146
      $region88: #{roberta_for_sequence_classification.5} parent=83 // pred_fallthru
        _
    $region84: #{roberta_for_sequence_classification.5} parent=5 // pred_fallthru
      _
  $region6: #{roberta_for_sequence_classification.5} parent=0 // loop_footer
    %s24 = sadd.s32 1, %s20
  $region7: #{roberta_for_sequence_classification.5} parent=0 // loop_footer_branch
    %19 = sbr.rel target = $region3
  $region8: #{roberta_for_sequence_classification.5} parent=0 // loop_exit
    _

</llo_original>
